<compile_context>
chip_gen: v7x
topology: tpu7x:2x2x1
jax: 0.10.0
libtpu: 0.0.40
codegen_flags: <defaults>
</compile_context>

<pallas_src>
import functools

import numpy as np
import jax
import jax.numpy as jnp
from jax.experimental import pallas as pl
from jax.experimental.pallas import tpu as pltpu

START_TAG = '<START>'
STOP_TAG = '<STOP>'
NEG_INF = -100000000.0           # same sentinel as the PyTorch reference
VERY_NEG = -3.0e38               # select-only filler (never added to anything)


def _vmem_specs(n):
    return [pl.BlockSpec(memory_space=pltpu.MemorySpace.VMEM) for _ in range(n)]


# ----------------------------------------------------------------------------
# Fused BiLSTM + hidden2tag + Viterbi (+ back-trace) kernel
# ----------------------------------------------------------------------------
def bilstm_crf_kernel(emb_ref, wih_ref, whh_ref, b_ref, gmul_ref, gsub_ref,
                      wtag_ref, btag_ref, trans_ref, trans_t_ref,
                      score_ref, path_ref, *, start_idx, stop_idx):
    T, _ = emb_ref.shape
    H2 = whh_ref.shape[0]            # 2H : [fwd H | bwd H] packed along lanes
    H = H2 // 2
    G8 = wih_ref.shape[1]            # 8H : 4 gate blocks of width 2H
    K = trans_ref.shape[0]

    # ---------------- packed input projection (one lane-dense matmul) -------
    xp = jnp.dot(emb_ref[...], wih_ref[...],
                 preferred_element_type=jnp.float32) + b_ref[...]     # (T, 8H)

    # Lane mask: inside each 2H gate block, the first H lanes belong to the
    # forward direction, the next H to the backward direction.
    lane8 = jax.lax.broadcasted_iota(jnp.int32, (1, G8), 1)
    fwd_mask8 = jnp.zeros((1, G8), jnp.bool_)
    for g in range(4):
        lo = g * H2
        fwd_mask8 = jnp.logical_or(
            fwd_mask8, jnp.logical_and(lane8 >= lo, lane8 < lo + H))

    # Hoisted fwd/bwd time-select of the input projection (off the serial
    # chain: depends only on xp, not on the recurrent state).
    xrows = [jnp.where(fwd_mask8, xp[s:s + 1, :], xp[T - 1 - s:T - s, :])
             for s in range(T)]

    whh = whh_ref[...]               # (2H, 8H) block-diagonal recurrent weight
    gmul = gmul_ref[...]             # (1, 8H): 2.0 on g-gate lanes, 1.0 elsewhere
    gsub = gsub_ref[...]             # (1, 8H): 1.0 on g-gate lanes, 0.0 elsewhere

    # ------------- fused bidirectional recurrence (fully unrolled) ----------
    h = jnp.zeros((1, H2), jnp.float32)      # [h_fwd | h_bwd]
    c = jnp.zeros((1, H2), jnp.float32)
    h_steps = []                              # hidden states stay in vregs
    for s in range(T):
        gates = xrows[s] + jnp.dot(h, whh, preferred_element_type=jnp.float32)
        # Single EUP push for all 4 gates: g-gate weights are pre-scaled by 2
        # on the host, so tanh(g) = 2*sigmoid(2g) - 1 = gmul*sigmoid(.) - gsub.
        act = jax.nn.sigmoid(gates) * gmul - gsub
        i_g = act[:, 0 * H2:1 * H2]
        f_g = act[:, 1 * H2:2 * H2]
        g_g = act[:, 2 * H2:3 * H2]
        o_g = act[:, 3 * H2:4 * H2]
        c = f_g * c + i_g * g_g
        h = o_g * jnp.tanh(c)
        h_steps.append(h)

    # ---- assemble (T, 2H) hidden sequence in registers (no VMEM round trip):
    # row t = [ h_fwd from step t | h_bwd from step T-1-t ].
    lane2 = jax.lax.broadcasted_iota(jnp.int32, (1, H2), 1)
    fwd_mask2 = lane2 < H
    sub_t = jax.lax.broadcasted_iota(jnp.int32, (T, H2), 0)
    hseq = jnp.zeros((T, H2), jnp.float32)
    for t in range(T):
        row_t = jnp.where(fwd_mask2, h_steps[t], h_steps[T - 1 - t])
        hseq = jnp.where(sub_t == t, row_t, hseq)

    # ---------------- hidden2tag (fused linear) ------------------------------
    feats = jnp.dot(hseq, wtag_ref[...],
                    preferred_element_type=jnp.float32) + btag_ref[...]  # (T,K)

    # ---------------- Viterbi forward recursion (ping-pong orientation) ------
    trans = trans_ref[...]            # (K, K): trans[i, j]   = score(j -> i)
    trans_t = trans_t_ref[...]        # (K, K): trans_t[j, i] = score(j -> i)
    neg = jnp.float32(NEG_INF)
    lane_k = jax.lax.broadcasted_iota(jnp.int32, (1, K), 1)
    sub_k = jax.lax.broadcasted_iota(jnp.int32, (K, 1), 0)
    j_lane_kk = jax.lax.broadcasted_iota(jnp.int32, (K, K), 1)
    j_sub_kk = jax.lax.broadcasted_iota(jnp.int32, (K, K), 0)
    eye_kk = j_sub_kk == j_lane_kk

    # Emission rows needed as columns (even steps) are pre-oriented here; they
    # do not depend on the forward variable, so they sit off the serial chain.
    feats_cols = {
        t: jnp.max(jnp.where(eye_kk, feats[t:t + 1, :], jnp.float32(VERY_NEG)),
                   axis=1, keepdims=True)
        for t in range(0, T, 2)
    }

    # Argmax emulated via float equality against the exact max; ties break to
    # the smallest index (matches np.argmax).  Keep everything in f32.
    fv = jnp.where(lane_k == start_idx, jnp.float32(0.0), neg)        # row (1,K)
    bps = []                           # backpointers stay in registers
    for t in range(T):
        if t % 2 == 0:
            # fv is a row over prev tag j -> lane-reduce yields a column over i
            ntv = fv + trans                                          # (K, K)
            mx = jnp.max(ntv, axis=1, keepdims=True)                  # (K, 1)
            bp = jnp.min(jnp.where(ntv == mx, j_lane_kk, K),
                         axis=1, keepdims=True)                       # (K, 1)
            fv = mx + feats_cols[t]                                   # col (K,1)
        else:
            # fv is a column over prev tag j -> sublane-reduce yields a row
            ntv = fv + trans_t                                        # (K, K)
            mx = jnp.max(ntv, axis=0, keepdims=True)                  # (1, K)
            bp = jnp.min(jnp.where(ntv == mx, j_sub_kk, K),
                         axis=0, keepdims=True)                       # (1, K)
            fv = mx + feats[t:t + 1, :]                               # row (1,K)
        bps.append(bp)

    if (T - 1) % 2 == 1:              # fv ends as a row over the last tag
        terminal = fv + trans[stop_idx:stop_idx + 1, :]               # (1, K)
        best_score = jnp.max(terminal, axis=1, keepdims=True)         # (1, 1)
        cur = jnp.min(jnp.where(terminal == best_score, lane_k, K),
                      axis=1, keepdims=True)                          # (1, 1)
    else:                             # fv ends as a column over the last tag
        terminal = fv + trans_t[:, stop_idx:stop_idx + 1]             # (K, 1)
        best_score = jnp.max(terminal, axis=0, keepdims=True)         # (1, 1)
        cur = jnp.min(jnp.where(terminal == best_score, sub_k, K),
                      axis=0, keepdims=True)                          # (1, 1)

    # ---------------- back-trace on device (no host round-trip) --------------
    path_vals = [None] * T
    path_vals[T - 1] = cur
    for t in range(T - 1, 0, -1):
        if t % 2 == 0:                # bp is a column (K,1) indexed by tag i
            cur = jnp.sum(jnp.where(sub_k == cur, bps[t], 0),
                          axis=0, keepdims=True)
        else:                         # bp is a row (1,K) indexed by tag i
            cur = jnp.sum(jnp.where(lane_k == cur, bps[t], 0),
                          axis=1, keepdims=True)
        path_vals[t - 1] = cur
    start_check = jnp.sum(jnp.where(sub_k == cur, bps[0], 0),
                          axis=0, keepdims=True)          # bps[0] is a column

    # Pack [start_check, path_0, ..., path_{T-1}] into one row, single store.
    lane_tp = jax.lax.broadcasted_iota(jnp.int32, (1, T + 1), 1)
    path_vec = jnp.where(lane_tp == 0, start_check,
                         jnp.zeros((1, T + 1), jnp.int32))
    for t in range(T):
        path_vec = jnp.where(lane_tp == (t + 1), path_vals[t], path_vec)

    score_ref[...] = best_score
    path_ref[...] = path_vec


def bilstm_crf_forward_pallas(embeds, wih_pack, whh_pack, b_pack,
                              gate_mul, gate_sub, w_tag_pack, b_tag,
                              transitions, transitions_t,
                              start_idx, stop_idx):
    T = embeds.shape[0]
    H2 = whh_pack.shape[0]
    K = transitions.shape[0]
    # Size invariants of the single-vreg lane packing / unrolled loops.
    assert 4 * H2 <= 128, "packed gates (8H) must fit in one 128-lane vreg"
    assert K <= 128 and (T + 1) <= 128
    # TODO(synk): for T beyond ~64 switch the recurrence/Viterbi/back-trace to
    # lax.fori_loop (+ VMEM hidden scratch) to avoid instruction-memory blowup.
    assert T <= 64
    kernel = functools.partial(bilstm_crf_kernel,
                               start_idx=start_idx, stop_idx=stop_idx)
    return pl.pallas_call(
        kernel,
        out_shape=(jax.ShapeDtypeStruct((1, 1), jnp.float32),
                   jax.ShapeDtypeStruct((1, T + 1), jnp.int32)),
        in_specs=_vmem_specs(10),
        out_specs=tuple(_vmem_specs(2)),
    )(embeds, wih_pack, whh_pack, b_pack, gate_mul, gate_sub,
      w_tag_pack, b_tag, transitions, transitions_t)


# ----------------------------------------------------------------------------
# Parameter setup (matches nn.Module shapes) + gate/direction packing
# ----------------------------------------------------------------------------
def init_params(key, vocab_size, embedding_dim, hidden_dim, tag_to_ix):
    K = len(tag_to_ix)
    H = hidden_dim // 2
    E = embedding_dim
    H2 = 2 * H
    keys = jax.random.split(key, 12)
    embedding = jax.random.normal(keys[0], (vocab_size, E), jnp.float32)
    scale = 1.0 / float(np.sqrt(H))
    W_ih_f = jax.random.normal(keys[1], (4 * H, E), jnp.float32) * scale
    W_hh_f = jax.random.normal(keys[2], (4 * H, H), jnp.float32) * scale
    b_ih_f = jax.random.normal(keys[3], (4 * H,), jnp.float32) * 0.1
    b_hh_f = jax.random.normal(keys[4], (4 * H,), jnp.float32) * 0.1
    W_ih_b = jax.random.normal(keys[5], (4 * H, E), jnp.float32) * scale
    W_hh_b = jax.random.normal(keys[6], (4 * H, H), jnp.float32) * scale
    b_ih_b = jax.random.normal(keys[7], (4 * H,), jnp.float32) * 0.1
    b_hh_b = jax.random.normal(keys[8], (4 * H,), jnp.float32) * 0.1
    W_tag = jax.random.normal(keys[9], (K, hidden_dim), jnp.float32) / float(np.sqrt(hidden_dim))
    b_tag = jax.random.normal(keys[10], (K,), jnp.float32) * 0.1
    transitions = jax.random.normal(keys[11], (K, K), jnp.float32)
    transitions = transitions.at[tag_to_ix[START_TAG], :].set(NEG_INF)
    transitions = transitions.at[:, tag_to_ix[STOP_TAG]].set(NEG_INF)

    # ---- pack gates + directions along 8H lanes: block g = [fwd H | bwd H]
    Wif, Whf, bif, bhf = map(np.asarray, (W_ih_f, W_hh_f, b_ih_f, b_hh_f))
    Wib, Whb, bib, bhb = map(np.asarray, (W_ih_b, W_hh_b, b_ih_b, b_hh_b))
    wih_pack = np.zeros((E, 4 * H2), np.float32)
    whh_pack = np.zeros((H2, 4 * H2), np.float32)   # block-diagonal per gate
    b_pack = np.zeros((1, 4 * H2), np.float32)
    for g in range(4):                               # PyTorch gate order i,f,g,o
        lo = g * H2
        wih_pack[:, lo:lo + H] = Wif[g * H:(g + 1) * H, :].T
        whh_pack[0:H, lo:lo + H] = Whf[g * H:(g + 1) * H, :].T
        b_pack[0, lo:lo + H] = bif[g * H:(g + 1) * H] + bhf[g * H:(g + 1) * H]
        wih_pack[:, lo + H:lo + H2] = Wib[g * H:(g + 1) * H, :].T
        whh_pack[H:H2, lo + H:lo + H2] = Whb[g * H:(g + 1) * H, :].T
        b_pack[0, lo + H:lo + H2] = bib[g * H:(g + 1) * H] + bhb[g * H:(g + 1) * H]

    # Pre-scale the g-gate block (gate index 2) by 2 so that the kernel needs
    # a single sigmoid over all gates: tanh(g) = 2*sigmoid(2g) - 1.
    glo = 2 * H2
    wih_pack[:, glo:glo + H2] *= 2.0
    whh_pack[:, glo:glo + H2] *= 2.0
    b_pack[:, glo:glo + H2] *= 2.0
    gate_mul = np.ones((1, 4 * H2), np.float32)
    gate_mul[0, glo:glo + H2] = 2.0
    gate_sub = np.zeros((1, 4 * H2), np.float32)
    gate_sub[0, glo:glo + H2] = 1.0

    return dict(
        # raw weights (kept for the pure-numpy reference check)
        embedding=embedding,
        W_ih_f=W_ih_f, W_hh_f=W_hh_f, b_ih_f=b_ih_f, b_hh_f=b_hh_f,
        W_ih_b=W_ih_b, W_hh_b=W_hh_b, b_ih_b=b_ih_b, b_hh_b=b_hh_b,
        W_tag=W_tag, b_tag_raw=b_tag, transitions=transitions,
        # packed kernel inputs
        wih_pack=jnp.asarray(wih_pack), whh_pack=jnp.asarray(whh_pack),
        b_pack=jnp.asarray(b_pack),
        gate_mul=jnp.asarray(gate_mul), gate_sub=jnp.asarray(gate_sub),
        w_tag_pack=jnp.asarray(np.asarray(W_tag).T),
        b_tag=jnp.asarray(np.asarray(b_tag).reshape(1, K)),
        transitions_t=jnp.asarray(np.asarray(transitions).T))


# ----------------------------------------------------------------------------
# Forward pass (== BiLSTM_CRF_MODIFY_PARALLEL.forward)
# ----------------------------------------------------------------------------
def forward(params, sentence, tag_to_ix):
    # TODO(synk): embedding gather stays as jnp.take outside the kernel; a
    # per-token DMA gather kernel is not worth it at this size.
    embeds = jnp.take(params['embedding'], sentence, axis=0)          # (T, E)
    score_dev, path_dev = bilstm_crf_forward_pallas(
        embeds, params['wih_pack'], params['whh_pack'], params['b_pack'],
        params['gate_mul'], params['gate_sub'],
        params['w_tag_pack'], params['b_tag'],
        params['transitions'], params['transitions_t'],
        tag_to_ix[START_TAG], tag_to_ix[STOP_TAG])
    jax.block_until_ready((score_dev, path_dev))
    path_np = np.asarray(path_dev)[0]
    if int(path_np[0]) != tag_to_ix[START_TAG]:
        print('Sanity check error')
    best_path = [int(v) for v in path_np[1:]]
    path_score = float(np.asarray(score_dev)[0, 0])
    return path_score, best_path


# ----------------------------------------------------------------------------
# Pure numpy reference (for correctness verification)
# ----------------------------------------------------------------------------
def _sigmoid_np(x):
    return 1.0 / (1.0 + np.exp(-x))


def reference_forward(params, sentence, tag_to_ix):
    emb = np.asarray(params['embedding'])[np.asarray(sentence)]
    H = np.asarray(params['W_hh_f']).shape[1]

    def run(Wih, Whh, bih, bhh, xs):
        h = np.zeros((H,), np.float32)
        c = np.zeros((H,), np.float32)
        outs = []
        for t in range(xs.shape[0]):
            g = Wih @ xs[t] + bih + Whh @ h + bhh
            i = _sigmoid_np(g[0:H]); f = _sigmoid_np(g[H:2 * H])
            gg = np.tanh(g[2 * H:3 * H]); o = _sigmoid_np(g[3 * H:4 * H])
            c = f * c + i * gg
            h = o * np.tanh(c)
            outs.append(h)
        return np.stack(outs)

    p = {k: np.asarray(v) for k, v in params.items()}
    out_f = run(p['W_ih_f'], p['W_hh_f'], p['b_ih_f'], p['b_hh_f'], emb)
    out_b = run(p['W_ih_b'], p['W_hh_b'], p['b_ih_b'], p['b_hh_b'],
                emb[::-1])[::-1]
    lstm_out = np.concatenate([out_f, out_b], axis=1)
    feats = lstm_out @ p['W_tag'].T + p['b_tag_raw']
    trans = p['transitions']
    K = trans.shape[0]

    fv = np.full((K,), NEG_INF, np.float32)
    fv[tag_to_ix[START_TAG]] = 0.0
    bps = []
    for t in range(feats.shape[0]):
        ntv = fv[None, :] + trans
        bps.append(np.argmax(ntv, axis=1))
        fv = ntv.max(axis=1) + feats[t]
    terminal = fv + trans[tag_to_ix[STOP_TAG]]
    best = int(np.argmax(terminal))
    score = float(terminal[best])
    path = [best]
    for bp in reversed(bps):
        best = int(bp[best])
        path.append(best)
    start = path.pop()
    assert start == tag_to_ix[START_TAG]
    path.reverse()
    return score, path, feats


def _score_path_np(feats, trans, path, start_idx, stop_idx):
    s, prev = 0.0, start_idx
    for t, tg in enumerate(path):
        s += float(trans[tg, prev]) + float(feats[t, tg])
        prev = tg
    return s + float(trans[stop_idx, prev])


if __name__ == "__main__":
    tag_to_ix = {'B': 0, 'I': 1, 'O': 2, START_TAG: 3, STOP_TAG: 4}
    vocab_size, embedding_dim, hidden_dim, seq_len = 50, 16, 32, 8

    key = jax.random.PRNGKey(0)
    params = init_params(key, vocab_size, embedding_dim, hidden_dim, tag_to_ix)
    sentence = jax.random.randint(jax.random.fold_in(key, 123), (seq_len,),
                                  0, vocab_size, dtype=jnp.int32)

    score, tag_seq = forward(params, sentence, tag_to_ix)

    # correctness checks against a pure-numpy reference
    ref_score, ref_path, ref_feats = reference_forward(params, sentence, tag_to_ix)
    assert len(tag_seq) == seq_len
    assert all(0 <= t < len(tag_to_ix) for t in tag_seq)
    tol = 1e-2 * max(1.0, abs(ref_score))
    assert abs(score - ref_score) <= tol, (score, ref_score)
    path_rescore = _score_path_np(ref_feats, np.asarray(params['transitions']),
                                  tag_seq, tag_to_ix[START_TAG],
                                  tag_to_ix[STOP_TAG])
    assert abs(path_rescore - score) <= tol, (path_rescore, score)

    print("KERNEL_OK")
</pallas_src>

<mosaic_0001>
module attributes {stable_mosaic.version = 11 : i64} {
  func.func @bilstm_crf_kernel(%arg0: memref<8x16xf32, #tpu.memory_space<vmem>>, %arg1: memref<16x128xf32, #tpu.memory_space<vmem>>, %arg2: memref<32x128xf32, #tpu.memory_space<vmem>>, %arg3: memref<1x128xf32, #tpu.memory_space<vmem>>, %arg4: memref<1x128xf32, #tpu.memory_space<vmem>>, %arg5: memref<1x128xf32, #tpu.memory_space<vmem>>, %arg6: memref<32x5xf32, #tpu.memory_space<vmem>>, %arg7: memref<1x5xf32, #tpu.memory_space<vmem>>, %arg8: memref<5x5xf32, #tpu.memory_space<vmem>>, %arg9: memref<5x5xf32, #tpu.memory_space<vmem>>, %arg10: memref<1x1xf32, #tpu.memory_space<vmem>>, %arg11: memref<1x9xi32, #tpu.memory_space<vmem>>) attributes {dimension_semantics = [], scalar_prefetch = 0 : i64, scratch_operands = 0 : i64, tpu.core_type = #tpu.core_type<tc>} {
    %c0 = arith.constant 0 : index
    %c0_0 = arith.constant 0 : index
    %0 = vector.load %arg0[%c0, %c0_0] : memref<8x16xf32, #tpu.memory_space<vmem>>, vector<8x16xf32>
    %c0_1 = arith.constant 0 : index
    %c0_2 = arith.constant 0 : index
    %1 = vector.load %arg1[%c0_1, %c0_2] : memref<16x128xf32, #tpu.memory_space<vmem>>, vector<16x128xf32>
    %cst = arith.constant dense<0.000000e+00> : vector<8x128xf32>
    %2 = tpu.matmul %0, %1, %cst {dimension_numbers = #tpu.dot_dimension_numbers<[1], [0], [0], [1], [0, 0, 1, 1], [], []>} : vector<8x16xf32>, vector<16x128xf32>, vector<8x128xf32> -> vector<8x128xf32>
    %c0_3 = arith.constant 0 : index
    %c0_4 = arith.constant 0 : index
    %3 = vector.load %arg3[%c0_3, %c0_4] : memref<1x128xf32, #tpu.memory_space<vmem>>, vector<1x128xf32>
    %4 = vector.broadcast %3 : vector<1x128xf32> to vector<8x128xf32>
    %5 = arith.addf %2, %4 : vector<8x128xf32>
    %6 = tpu.iota {dimensions = array<i32: 1>} : vector<1x128xi32>
    %false = arith.constant false
    %7 = vector.broadcast %false : i1 to vector<1x128xi1>
    %c0_i32 = arith.constant 0 : i32
    %8 = vector.broadcast %c0_i32 : i32 to vector<1x128xi32>
    %9 = arith.cmpi sge, %6, %8 : vector<1x128xi32>
    %c16_i32 = arith.constant 16 : i32
    %10 = vector.broadcast %c16_i32 : i32 to vector<1x128xi32>
    %11 = arith.cmpi slt, %6, %10 : vector<1x128xi32>
    %12 = arith.andi %9, %11 : vector<1x128xi1>
    %13 = arith.ori %7, %12 : vector<1x128xi1>
    %c32_i32 = arith.constant 32 : i32
    %14 = vector.broadcast %c32_i32 : i32 to vector<1x128xi32>
    %15 = arith.cmpi sge, %6, %14 : vector<1x128xi32>
    %c48_i32 = arith.constant 48 : i32
    %16 = vector.broadcast %c48_i32 : i32 to vector<1x128xi32>
    %17 = arith.cmpi slt, %6, %16 : vector<1x128xi32>
    %18 = arith.andi %15, %17 : vector<1x128xi1>
    %19 = arith.ori %13, %18 : vector<1x128xi1>
    %c64_i32 = arith.constant 64 : i32
    %20 = vector.broadcast %c64_i32 : i32 to vector<1x128xi32>
    %21 = arith.cmpi sge, %6, %20 : vector<1x128xi32>
    %c80_i32 = arith.constant 80 : i32
    %22 = vector.broadcast %c80_i32 : i32 to vector<1x128xi32>
    %23 = arith.cmpi slt, %6, %22 : vector<1x128xi32>
    %24 = arith.andi %21, %23 : vector<1x128xi1>
    %25 = arith.ori %19, %24 : vector<1x128xi1>
    %c96_i32 = arith.constant 96 : i32
    %26 = vector.broadcast %c96_i32 : i32 to vector<1x128xi32>
    %27 = arith.cmpi sge, %6, %26 : vector<1x128xi32>
    %c112_i32 = arith.constant 112 : i32
    %28 = vector.broadcast %c112_i32 : i32 to vector<1x128xi32>
    %29 = arith.cmpi slt, %6, %28 : vector<1x128xi32>
    %30 = arith.andi %27, %29 : vector<1x128xi1>
    %31 = arith.ori %25, %30 : vector<1x128xi1>
    %32 = vector.extract_strided_slice %5 {offsets = [0, 0], sizes = [1, 128], strides = [1, 1]} : vector<8x128xf32> to vector<1x128xf32>
    %33 = vector.extract_strided_slice %5 {offsets = [7, 0], sizes = [1, 128], strides = [1, 1]} : vector<8x128xf32> to vector<1x128xf32>
    %34 = arith.select %31, %32, %33 : vector<1x128xi1>, vector<1x128xf32>
    %35 = vector.extract_strided_slice %5 {offsets = [1, 0], sizes = [1, 128], strides = [1, 1]} : vector<8x128xf32> to vector<1x128xf32>
    %36 = vector.extract_strided_slice %5 {offsets = [6, 0], sizes = [1, 128], strides = [1, 1]} : vector<8x128xf32> to vector<1x128xf32>
    %37 = arith.select %31, %35, %36 : vector<1x128xi1>, vector<1x128xf32>
    %38 = vector.extract_strided_slice %5 {offsets = [2, 0], sizes = [1, 128], strides = [1, 1]} : vector<8x128xf32> to vector<1x128xf32>
    %39 = vector.extract_strided_slice %5 {offsets = [5, 0], sizes = [1, 128], strides = [1, 1]} : vector<8x128xf32> to vector<1x128xf32>
    %40 = arith.select %31, %38, %39 : vector<1x128xi1>, vector<1x128xf32>
    %41 = vector.extract_strided_slice %5 {offsets = [3, 0], sizes = [1, 128], strides = [1, 1]} : vector<8x128xf32> to vector<1x128xf32>
    %42 = vector.extract_strided_slice %5 {offsets = [4, 0], sizes = [1, 128], strides = [1, 1]} : vector<8x128xf32> to vector<1x128xf32>
    %43 = arith.select %31, %41, %42 : vector<1x128xi1>, vector<1x128xf32>
    %44 = vector.extract_strided_slice %5 {offsets = [4, 0], sizes = [1, 128], strides = [1, 1]} : vector<8x128xf32> to vector<1x128xf32>
    %45 = vector.extract_strided_slice %5 {offsets = [3, 0], sizes = [1, 128], strides = [1, 1]} : vector<8x128xf32> to vector<1x128xf32>
    %46 = arith.select %31, %44, %45 : vector<1x128xi1>, vector<1x128xf32>
    %47 = vector.extract_strided_slice %5 {offsets = [5, 0], sizes = [1, 128], strides = [1, 1]} : vector<8x128xf32> to vector<1x128xf32>
    %48 = vector.extract_strided_slice %5 {offsets = [2, 0], sizes = [1, 128], strides = [1, 1]} : vector<8x128xf32> to vector<1x128xf32>
    %49 = arith.select %31, %47, %48 : vector<1x128xi1>, vector<1x128xf32>
    %50 = vector.extract_strided_slice %5 {offsets = [6, 0], sizes = [1, 128], strides = [1, 1]} : vector<8x128xf32> to vector<1x128xf32>
    %51 = vector.extract_strided_slice %5 {offsets = [1, 0], sizes = [1, 128], strides = [1, 1]} : vector<8x128xf32> to vector<1x128xf32>
    %52 = arith.select %31, %50, %51 : vector<1x128xi1>, vector<1x128xf32>
    %53 = vector.extract_strided_slice %5 {offsets = [7, 0], sizes = [1, 128], strides = [1, 1]} : vector<8x128xf32> to vector<1x128xf32>
    %54 = vector.extract_strided_slice %5 {offsets = [0, 0], sizes = [1, 128], strides = [1, 1]} : vector<8x128xf32> to vector<1x128xf32>
    %55 = arith.select %31, %53, %54 : vector<1x128xi1>, vector<1x128xf32>
    %c0_5 = arith.constant 0 : index
    %c0_6 = arith.constant 0 : index
    %56 = vector.load %arg2[%c0_5, %c0_6] : memref<32x128xf32, #tpu.memory_space<vmem>>, vector<32x128xf32>
    %c0_7 = arith.constant 0 : index
    %c0_8 = arith.constant 0 : index
    %57 = vector.load %arg4[%c0_7, %c0_8] : memref<1x128xf32, #tpu.memory_space<vmem>>, vector<1x128xf32>
    %c0_9 = arith.constant 0 : index
    %c0_10 = arith.constant 0 : index
    %58 = vector.load %arg5[%c0_9, %c0_10] : memref<1x128xf32, #tpu.memory_space<vmem>>, vector<1x128xf32>
    %cst_11 = arith.constant 0.000000e+00 : f32
    %59 = vector.broadcast %cst_11 : f32 to vector<1x32xf32>
    %cst_12 = arith.constant 0.000000e+00 : f32
    %60 = vector.broadcast %cst_12 : f32 to vector<1x32xf32>
    %cst_13 = arith.constant dense<0.000000e+00> : vector<1x128xf32>
    %61 = tpu.matmul %59, %56, %cst_13 {dimension_numbers = #tpu.dot_dimension_numbers<[1], [0], [0], [1], [0, 0, 1, 1], [], []>} : vector<1x32xf32>, vector<32x128xf32>, vector<1x128xf32> -> vector<1x128xf32>
    %62 = arith.addf %34, %61 : vector<1x128xf32>
    %63 = arith.negf %62 : vector<1x128xf32>
    %64 = math.exp %63 : vector<1x128xf32>
    %cst_14 = arith.constant 1.000000e+00 : f32
    %65 = vector.broadcast %cst_14 : f32 to vector<1x128xf32>
    %66 = arith.addf %65, %64 : vector<1x128xf32>
    %67 = arith.divf %65, %66 : vector<1x128xf32>
    %68 = arith.mulf %67, %57 : vector<1x128xf32>
    %69 = arith.subf %68, %58 : vector<1x128xf32>
    %70 = vector.extract_strided_slice %69 {offsets = [0, 0], sizes = [1, 32], strides = [1, 1]} : vector<1x128xf32> to vector<1x32xf32>
    %71 = vector.extract_strided_slice %69 {offsets = [0, 32], sizes = [1, 32], strides = [1, 1]} : vector<1x128xf32> to vector<1x32xf32>
    %72 = vector.extract_strided_slice %69 {offsets = [0, 64], sizes = [1, 32], strides = [1, 1]} : vector<1x128xf32> to vector<1x32xf32>
    %73 = vector.extract_strided_slice %69 {offsets = [0, 96], sizes = [1, 32], strides = [1, 1]} : vector<1x128xf32> to vector<1x32xf32>
    %74 = arith.mulf %71, %60 : vector<1x32xf32>
    %75 = arith.mulf %70, %72 : vector<1x32xf32>
    %76 = arith.addf %74, %75 : vector<1x32xf32>
    %77 = math.tanh %76 : vector<1x32xf32>
    %78 = arith.mulf %73, %77 : vector<1x32xf32>
    %cst_15 = arith.constant dense<0.000000e+00> : vector<1x128xf32>
    %79 = tpu.matmul %78, %56, %cst_15 {dimension_numbers = #tpu.dot_dimension_numbers<[1], [0], [0], [1], [0, 0, 1, 1], [], []>} : vector<1x32xf32>, vector<32x128xf32>, vector<1x128xf32> -> vector<1x128xf32>
    %80 = arith.addf %37, %79 : vector<1x128xf32>
    %81 = arith.negf %80 : vector<1x128xf32>
    %82 = math.exp %81 : vector<1x128xf32>
    %cst_16 = arith.constant 1.000000e+00 : f32
    %83 = vector.broadcast %cst_16 : f32 to vector<1x128xf32>
    %84 = arith.addf %83, %82 : vector<1x128xf32>
    %85 = arith.divf %83, %84 : vector<1x128xf32>
    %86 = arith.mulf %85, %57 : vector<1x128xf32>
    %87 = arith.subf %86, %58 : vector<1x128xf32>
    %88 = vector.extract_strided_slice %87 {offsets = [0, 0], sizes = [1, 32], strides = [1, 1]} : vector<1x128xf32> to vector<1x32xf32>
    %89 = vector.extract_strided_slice %87 {offsets = [0, 32], sizes = [1, 32], strides = [1, 1]} : vector<1x128xf32> to vector<1x32xf32>
    %90 = vector.extract_strided_slice %87 {offsets = [0, 64], sizes = [1, 32], strides = [1, 1]} : vector<1x128xf32> to vector<1x32xf32>
    %91 = vector.extract_strided_slice %87 {offsets = [0, 96], sizes = [1, 32], strides = [1, 1]} : vector<1x128xf32> to vector<1x32xf32>
    %92 = arith.mulf %89, %76 : vector<1x32xf32>
    %93 = arith.mulf %88, %90 : vector<1x32xf32>
    %94 = arith.addf %92, %93 : vector<1x32xf32>
    %95 = math.tanh %94 : vector<1x32xf32>
    %96 = arith.mulf %91, %95 : vector<1x32xf32>
    %cst_17 = arith.constant dense<0.000000e+00> : vector<1x128xf32>
    %97 = tpu.matmul %96, %56, %cst_17 {dimension_numbers = #tpu.dot_dimension_numbers<[1], [0], [0], [1], [0, 0, 1, 1], [], []>} : vector<1x32xf32>, vector<32x128xf32>, vector<1x128xf32> -> vector<1x128xf32>
    %98 = arith.addf %40, %97 : vector<1x128xf32>
    %99 = arith.negf %98 : vector<1x128xf32>
    %100 = math.exp %99 : vector<1x128xf32>
    %cst_18 = arith.constant 1.000000e+00 : f32
    %101 = vector.broadcast %cst_18 : f32 to vector<1x128xf32>
    %102 = arith.addf %101, %100 : vector<1x128xf32>
    %103 = arith.divf %101, %102 : vector<1x128xf32>
    %104 = arith.mulf %103, %57 : vector<1x128xf32>
    %105 = arith.subf %104, %58 : vector<1x128xf32>
    %106 = vector.extract_strided_slice %105 {offsets = [0, 0], sizes = [1, 32], strides = [1, 1]} : vector<1x128xf32> to vector<1x32xf32>
    %107 = vector.extract_strided_slice %105 {offsets = [0, 32], sizes = [1, 32], strides = [1, 1]} : vector<1x128xf32> to vector<1x32xf32>
    %108 = vector.extract_strided_slice %105 {offsets = [0, 64], sizes = [1, 32], strides = [1, 1]} : vector<1x128xf32> to vector<1x32xf32>
    %109 = vector.extract_strided_slice %105 {offsets = [0, 96], sizes = [1, 32], strides = [1, 1]} : vector<1x128xf32> to vector<1x32xf32>
    %110 = arith.mulf %107, %94 : vector<1x32xf32>
    %111 = arith.mulf %106, %108 : vector<1x32xf32>
    %112 = arith.addf %110, %111 : vector<1x32xf32>
    %113 = math.tanh %112 : vector<1x32xf32>
    %114 = arith.mulf %109, %113 : vector<1x32xf32>
    %cst_19 = arith.constant dense<0.000000e+00> : vector<1x128xf32>
    %115 = tpu.matmul %114, %56, %cst_19 {dimension_numbers = #tpu.dot_dimension_numbers<[1], [0], [0], [1], [0, 0, 1, 1], [], []>} : vector<1x32xf32>, vector<32x128xf32>, vector<1x128xf32> -> vector<1x128xf32>
    %116 = arith.addf %43, %115 : vector<1x128xf32>
    %117 = arith.negf %116 : vector<1x128xf32>
    %118 = math.exp %117 : vector<1x128xf32>
    %cst_20 = arith.constant 1.000000e+00 : f32
    %119 = vector.broadcast %cst_20 : f32 to vector<1x128xf32>
    %120 = arith.addf %119, %118 : vector<1x128xf32>
    %121 = arith.divf %119, %120 : vector<1x128xf32>
    %122 = arith.mulf %121, %57 : vector<1x128xf32>
    %123 = arith.subf %122, %58 : vector<1x128xf32>
    %124 = vector.extract_strided_slice %123 {offsets = [0, 0], sizes = [1, 32], strides = [1, 1]} : vector<1x128xf32> to vector<1x32xf32>
    %125 = vector.extract_strided_slice %123 {offsets = [0, 32], sizes = [1, 32], strides = [1, 1]} : vector<1x128xf32> to vector<1x32xf32>
    %126 = vector.extract_strided_slice %123 {offsets = [0, 64], sizes = [1, 32], strides = [1, 1]} : vector<1x128xf32> to vector<1x32xf32>
    %127 = vector.extract_strided_slice %123 {offsets = [0, 96], sizes = [1, 32], strides = [1, 1]} : vector<1x128xf32> to vector<1x32xf32>
    %128 = arith.mulf %125, %112 : vector<1x32xf32>
    %129 = arith.mulf %124, %126 : vector<1x32xf32>
    %130 = arith.addf %128, %129 : vector<1x32xf32>
    %131 = math.tanh %130 : vector<1x32xf32>
    %132 = arith.mulf %127, %131 : vector<1x32xf32>
    %cst_21 = arith.constant dense<0.000000e+00> : vector<1x128xf32>
    %133 = tpu.matmul %132, %56, %cst_21 {dimension_numbers = #tpu.dot_dimension_numbers<[1], [0], [0], [1], [0, 0, 1, 1], [], []>} : vector<1x32xf32>, vector<32x128xf32>, vector<1x128xf32> -> vector<1x128xf32>
    %134 = arith.addf %46, %133 : vector<1x128xf32>
    %135 = arith.negf %134 : vector<1x128xf32>
    %136 = math.exp %135 : vector<1x128xf32>
    %cst_22 = arith.constant 1.000000e+00 : f32
    %137 = vector.broadcast %cst_22 : f32 to vector<1x128xf32>
    %138 = arith.addf %137, %136 : vector<1x128xf32>
    %139 = arith.divf %137, %138 : vector<1x128xf32>
    %140 = arith.mulf %139, %57 : vector<1x128xf32>
    %141 = arith.subf %140, %58 : vector<1x128xf32>
    %142 = vector.extract_strided_slice %141 {offsets = [0, 0], sizes = [1, 32], strides = [1, 1]} : vector<1x128xf32> to vector<1x32xf32>
    %143 = vector.extract_strided_slice %141 {offsets = [0, 32], sizes = [1, 32], strides = [1, 1]} : vector<1x128xf32> to vector<1x32xf32>
    %144 = vector.extract_strided_slice %141 {offsets = [0, 64], sizes = [1, 32], strides = [1, 1]} : vector<1x128xf32> to vector<1x32xf32>
    %145 = vector.extract_strided_slice %141 {offsets = [0, 96], sizes = [1, 32], strides = [1, 1]} : vector<1x128xf32> to vector<1x32xf32>
    %146 = arith.mulf %143, %130 : vector<1x32xf32>
    %147 = arith.mulf %142, %144 : vector<1x32xf32>
    %148 = arith.addf %146, %147 : vector<1x32xf32>
    %149 = math.tanh %148 : vector<1x32xf32>
    %150 = arith.mulf %145, %149 : vector<1x32xf32>
    %cst_23 = arith.constant dense<0.000000e+00> : vector<1x128xf32>
    %151 = tpu.matmul %150, %56, %cst_23 {dimension_numbers = #tpu.dot_dimension_numbers<[1], [0], [0], [1], [0, 0, 1, 1], [], []>} : vector<1x32xf32>, vector<32x128xf32>, vector<1x128xf32> -> vector<1x128xf32>
    %152 = arith.addf %49, %151 : vector<1x128xf32>
    %153 = arith.negf %152 : vector<1x128xf32>
    %154 = math.exp %153 : vector<1x128xf32>
    %cst_24 = arith.constant 1.000000e+00 : f32
    %155 = vector.broadcast %cst_24 : f32 to vector<1x128xf32>
    %156 = arith.addf %155, %154 : vector<1x128xf32>
    %157 = arith.divf %155, %156 : vector<1x128xf32>
    %158 = arith.mulf %157, %57 : vector<1x128xf32>
    %159 = arith.subf %158, %58 : vector<1x128xf32>
    %160 = vector.extract_strided_slice %159 {offsets = [0, 0], sizes = [1, 32], strides = [1, 1]} : vector<1x128xf32> to vector<1x32xf32>
    %161 = vector.extract_strided_slice %159 {offsets = [0, 32], sizes = [1, 32], strides = [1, 1]} : vector<1x128xf32> to vector<1x32xf32>
    %162 = vector.extract_strided_slice %159 {offsets = [0, 64], sizes = [1, 32], strides = [1, 1]} : vector<1x128xf32> to vector<1x32xf32>
    %163 = vector.extract_strided_slice %159 {offsets = [0, 96], sizes = [1, 32], strides = [1, 1]} : vector<1x128xf32> to vector<1x32xf32>
    %164 = arith.mulf %161, %148 : vector<1x32xf32>
    %165 = arith.mulf %160, %162 : vector<1x32xf32>
    %166 = arith.addf %164, %165 : vector<1x32xf32>
    %167 = math.tanh %166 : vector<1x32xf32>
    %168 = arith.mulf %163, %167 : vector<1x32xf32>
    %cst_25 = arith.constant dense<0.000000e+00> : vector<1x128xf32>
    %169 = tpu.matmul %168, %56, %cst_25 {dimension_numbers = #tpu.dot_dimension_numbers<[1], [0], [0], [1], [0, 0, 1, 1], [], []>} : vector<1x32xf32>, vector<32x128xf32>, vector<1x128xf32> -> vector<1x128xf32>
    %170 = arith.addf %52, %169 : vector<1x128xf32>
    %171 = arith.negf %170 : vector<1x128xf32>
    %172 = math.exp %171 : vector<1x128xf32>
    %cst_26 = arith.constant 1.000000e+00 : f32
    %173 = vector.broadcast %cst_26 : f32 to vector<1x128xf32>
    %174 = arith.addf %173, %172 : vector<1x128xf32>
    %175 = arith.divf %173, %174 : vector<1x128xf32>
    %176 = arith.mulf %175, %57 : vector<1x128xf32>
    %177 = arith.subf %176, %58 : vector<1x128xf32>
    %178 = vector.extract_strided_slice %177 {offsets = [0, 0], sizes = [1, 32], strides = [1, 1]} : vector<1x128xf32> to vector<1x32xf32>
    %179 = vector.extract_strided_slice %177 {offsets = [0, 32], sizes = [1, 32], strides = [1, 1]} : vector<1x128xf32> to vector<1x32xf32>
    %180 = vector.extract_strided_slice %177 {offsets = [0, 64], sizes = [1, 32], strides = [1, 1]} : vector<1x128xf32> to vector<1x32xf32>
    %181 = vector.extract_strided_slice %177 {offsets = [0, 96], sizes = [1, 32], strides = [1, 1]} : vector<1x128xf32> to vector<1x32xf32>
    %182 = arith.mulf %179, %166 : vector<1x32xf32>
    %183 = arith.mulf %178, %180 : vector<1x32xf32>
    %184 = arith.addf %182, %183 : vector<1x32xf32>
    %185 = math.tanh %184 : vector<1x32xf32>
    %186 = arith.mulf %181, %185 : vector<1x32xf32>
    %cst_27 = arith.constant dense<0.000000e+00> : vector<1x128xf32>
    %187 = tpu.matmul %186, %56, %cst_27 {dimension_numbers = #tpu.dot_dimension_numbers<[1], [0], [0], [1], [0, 0, 1, 1], [], []>} : vector<1x32xf32>, vector<32x128xf32>, vector<1x128xf32> -> vector<1x128xf32>
    %188 = arith.addf %55, %187 : vector<1x128xf32>
    %189 = arith.negf %188 : vector<1x128xf32>
    %190 = math.exp %189 : vector<1x128xf32>
    %cst_28 = arith.constant 1.000000e+00 : f32
    %191 = vector.broadcast %cst_28 : f32 to vector<1x128xf32>
    %192 = arith.addf %191, %190 : vector<1x128xf32>
    %193 = arith.divf %191, %192 : vector<1x128xf32>
    %194 = arith.mulf %193, %57 : vector<1x128xf32>
    %195 = arith.subf %194, %58 : vector<1x128xf32>
    %196 = vector.extract_strided_slice %195 {offsets = [0, 0], sizes = [1, 32], strides = [1, 1]} : vector<1x128xf32> to vector<1x32xf32>
    %197 = vector.extract_strided_slice %195 {offsets = [0, 32], sizes = [1, 32], strides = [1, 1]} : vector<1x128xf32> to vector<1x32xf32>
    %198 = vector.extract_strided_slice %195 {offsets = [0, 64], sizes = [1, 32], strides = [1, 1]} : vector<1x128xf32> to vector<1x32xf32>
    %199 = vector.extract_strided_slice %195 {offsets = [0, 96], sizes = [1, 32], strides = [1, 1]} : vector<1x128xf32> to vector<1x32xf32>
    %200 = arith.mulf %197, %184 : vector<1x32xf32>
    %201 = arith.mulf %196, %198 : vector<1x32xf32>
    %202 = arith.addf %200, %201 : vector<1x32xf32>
    %203 = math.tanh %202 : vector<1x32xf32>
    %204 = arith.mulf %199, %203 : vector<1x32xf32>
    %205 = tpu.iota {dimensions = array<i32: 1>} : vector<1x32xi32>
    %c16_i32_29 = arith.constant 16 : i32
    %206 = vector.broadcast %c16_i32_29 : i32 to vector<1x32xi32>
    %207 = arith.cmpi slt, %205, %206 : vector<1x32xi32>
    %208 = tpu.iota {dimensions = array<i32: 0>} : vector<8x32xi32>
    %cst_30 = arith.constant 0.000000e+00 : f32
    %209 = vector.broadcast %cst_30 : f32 to vector<8x32xf32>
    %210 = arith.select %207, %78, %204 : vector<1x32xi1>, vector<1x32xf32>
    %c0_i32_31 = arith.constant 0 : i32
    %211 = vector.broadcast %c0_i32_31 : i32 to vector<8x32xi32>
    %212 = arith.cmpi eq, %208, %211 : vector<8x32xi32>
    %213 = vector.shape_cast %210 : vector<1x32xf32> to vector<1x32xf32>
    %214 = vector.broadcast %213 : vector<1x32xf32> to vector<8x32xf32>
    %215 = arith.select %212, %214, %209 : vector<8x32xi1>, vector<8x32xf32>
    %216 = arith.select %207, %96, %186 : vector<1x32xi1>, vector<1x32xf32>
    %c1_i32 = arith.constant 1 : i32
    %217 = vector.broadcast %c1_i32 : i32 to vector<8x32xi32>
    %218 = arith.cmpi eq, %208, %217 : vector<8x32xi32>
    %219 = vector.shape_cast %216 : vector<1x32xf32> to vector<1x32xf32>
    %220 = vector.broadcast %219 : vector<1x32xf32> to vector<8x32xf32>
    %221 = arith.select %218, %220, %215 : vector<8x32xi1>, vector<8x32xf32>
    %222 = arith.select %207, %114, %168 : vector<1x32xi1>, vector<1x32xf32>
    %c2_i32 = arith.constant 2 : i32
    %223 = vector.broadcast %c2_i32 : i32 to vector<8x32xi32>
    %224 = arith.cmpi eq, %208, %223 : vector<8x32xi32>
    %225 = vector.shape_cast %222 : vector<1x32xf32> to vector<1x32xf32>
    %226 = vector.broadcast %225 : vector<1x32xf32> to vector<8x32xf32>
    %227 = arith.select %224, %226, %221 : vector<8x32xi1>, vector<8x32xf32>
    %228 = arith.select %207, %132, %150 : vector<1x32xi1>, vector<1x32xf32>
    %c3_i32 = arith.constant 3 : i32
    %229 = vector.broadcast %c3_i32 : i32 to vector<8x32xi32>
    %230 = arith.cmpi eq, %208, %229 : vector<8x32xi32>
    %231 = vector.shape_cast %228 : vector<1x32xf32> to vector<1x32xf32>
    %232 = vector.broadcast %231 : vector<1x32xf32> to vector<8x32xf32>
    %233 = arith.select %230, %232, %227 : vector<8x32xi1>, vector<8x32xf32>
    %234 = arith.select %207, %150, %132 : vector<1x32xi1>, vector<1x32xf32>
    %c4_i32 = arith.constant 4 : i32
    %235 = vector.broadcast %c4_i32 : i32 to vector<8x32xi32>
    %236 = arith.cmpi eq, %208, %235 : vector<8x32xi32>
    %237 = vector.shape_cast %234 : vector<1x32xf32> to vector<1x32xf32>
    %238 = vector.broadcast %237 : vector<1x32xf32> to vector<8x32xf32>
    %239 = arith.select %236, %238, %233 : vector<8x32xi1>, vector<8x32xf32>
    %240 = arith.select %207, %168, %114 : vector<1x32xi1>, vector<1x32xf32>
    %c5_i32 = arith.constant 5 : i32
    %241 = vector.broadcast %c5_i32 : i32 to vector<8x32xi32>
    %242 = arith.cmpi eq, %208, %241 : vector<8x32xi32>
    %243 = vector.shape_cast %240 : vector<1x32xf32> to vector<1x32xf32>
    %244 = vector.broadcast %243 : vector<1x32xf32> to vector<8x32xf32>
    %245 = arith.select %242, %244, %239 : vector<8x32xi1>, vector<8x32xf32>
    %246 = arith.select %207, %186, %96 : vector<1x32xi1>, vector<1x32xf32>
    %c6_i32 = arith.constant 6 : i32
    %247 = vector.broadcast %c6_i32 : i32 to vector<8x32xi32>
    %248 = arith.cmpi eq, %208, %247 : vector<8x32xi32>
    %249 = vector.shape_cast %246 : vector<1x32xf32> to vector<1x32xf32>
    %250 = vector.broadcast %249 : vector<1x32xf32> to vector<8x32xf32>
    %251 = arith.select %248, %250, %245 : vector<8x32xi1>, vector<8x32xf32>
    %252 = arith.select %207, %204, %78 : vector<1x32xi1>, vector<1x32xf32>
    %c7_i32 = arith.constant 7 : i32
    %253 = vector.broadcast %c7_i32 : i32 to vector<8x32xi32>
    %254 = arith.cmpi eq, %208, %253 : vector<8x32xi32>
    %255 = vector.shape_cast %252 : vector<1x32xf32> to vector<1x32xf32>
    %256 = vector.broadcast %255 : vector<1x32xf32> to vector<8x32xf32>
    %257 = arith.select %254, %256, %251 : vector<8x32xi1>, vector<8x32xf32>
    %c0_32 = arith.constant 0 : index
    %c0_33 = arith.constant 0 : index
    %258 = vector.load %arg6[%c0_32, %c0_33] : memref<32x5xf32, #tpu.memory_space<vmem>>, vector<32x5xf32>
    %cst_34 = arith.constant dense<0.000000e+00> : vector<8x5xf32>
    %259 = tpu.matmul %257, %258, %cst_34 {dimension_numbers = #tpu.dot_dimension_numbers<[1], [0], [0], [1], [0, 0, 1, 1], [], []>} : vector<8x32xf32>, vector<32x5xf32>, vector<8x5xf32> -> vector<8x5xf32>
    %c0_35 = arith.constant 0 : index
    %c0_36 = arith.constant 0 : index
    %260 = vector.load %arg7[%c0_35, %c0_36] : memref<1x5xf32, #tpu.memory_space<vmem>>, vector<1x5xf32>
    %261 = vector.broadcast %260 : vector<1x5xf32> to vector<8x5xf32>
    %262 = arith.addf %259, %261 : vector<8x5xf32>
    %c0_37 = arith.constant 0 : index
    %c0_38 = arith.constant 0 : index
    %263 = vector.load %arg8[%c0_37, %c0_38] : memref<5x5xf32, #tpu.memory_space<vmem>>, vector<5x5xf32>
    %c0_39 = arith.constant 0 : index
    %c0_40 = arith.constant 0 : index
    %264 = vector.load %arg9[%c0_39, %c0_40] : memref<5x5xf32, #tpu.memory_space<vmem>>, vector<5x5xf32>
    %265 = tpu.iota {dimensions = array<i32: 1>} : vector<1x5xi32>
    %266 = tpu.iota {dimensions = array<i32: 0>} : vector<5x1xi32>
    %267 = tpu.iota {dimensions = array<i32: 1>} : vector<5x5xi32>
    %268 = tpu.iota {dimensions = array<i32: 0>} : vector<5x5xi32>
    %269 = arith.cmpi eq, %268, %267 : vector<5x5xi32>
    %270 = vector.extract_strided_slice %262 {offsets = [0, 0], sizes = [1, 5], strides = [1, 1]} : vector<8x5xf32> to vector<1x5xf32>
    %cst_41 = arith.constant -3.000000e+38 : f32
    %271 = vector.shape_cast %270 : vector<1x5xf32> to vector<1x5xf32>
    %272 = vector.broadcast %271 : vector<1x5xf32> to vector<5x5xf32>
    %273 = vector.broadcast %cst_41 : f32 to vector<5x5xf32>
    %274 = arith.select %269, %272, %273 : vector<5x5xi1>, vector<5x5xf32>
    %cst_42 = arith.constant dense<0xFF800000> : vector<5xf32>
    %275 = vector.multi_reduction <maximumf>, %274, %cst_42 [1] : vector<5x5xf32> to vector<5xf32>
    %276 = vector.shape_cast %275 : vector<5xf32> to vector<5x1xf32>
    %277 = vector.extract_strided_slice %262 {offsets = [2, 0], sizes = [1, 5], strides = [1, 1]} : vector<8x5xf32> to vector<1x5xf32>
    %cst_43 = arith.constant -3.000000e+38 : f32
    %278 = vector.shape_cast %277 : vector<1x5xf32> to vector<1x5xf32>
    %279 = vector.broadcast %278 : vector<1x5xf32> to vector<5x5xf32>
    %280 = vector.broadcast %cst_43 : f32 to vector<5x5xf32>
    %281 = arith.select %269, %279, %280 : vector<5x5xi1>, vector<5x5xf32>
    %cst_44 = arith.constant dense<0xFF800000> : vector<5xf32>
    %282 = vector.multi_reduction <maximumf>, %281, %cst_44 [1] : vector<5x5xf32> to vector<5xf32>
    %283 = vector.shape_cast %282 : vector<5xf32> to vector<5x1xf32>
    %284 = vector.extract_strided_slice %262 {offsets = [4, 0], sizes = [1, 5], strides = [1, 1]} : vector<8x5xf32> to vector<1x5xf32>
    %cst_45 = arith.constant -3.000000e+38 : f32
    %285 = vector.shape_cast %284 : vector<1x5xf32> to vector<1x5xf32>
    %286 = vector.broadcast %285 : vector<1x5xf32> to vector<5x5xf32>
    %287 = vector.broadcast %cst_45 : f32 to vector<5x5xf32>
    %288 = arith.select %269, %286, %287 : vector<5x5xi1>, vector<5x5xf32>
    %cst_46 = arith.constant dense<0xFF800000> : vector<5xf32>
    %289 = vector.multi_reduction <maximumf>, %288, %cst_46 [1] : vector<5x5xf32> to vector<5xf32>
    %290 = vector.shape_cast %289 : vector<5xf32> to vector<5x1xf32>
    %291 = vector.extract_strided_slice %262 {offsets = [6, 0], sizes = [1, 5], strides = [1, 1]} : vector<8x5xf32> to vector<1x5xf32>
    %cst_47 = arith.constant -3.000000e+38 : f32
    %292 = vector.shape_cast %291 : vector<1x5xf32> to vector<1x5xf32>
    %293 = vector.broadcast %292 : vector<1x5xf32> to vector<5x5xf32>
    %294 = vector.broadcast %cst_47 : f32 to vector<5x5xf32>
    %295 = arith.select %269, %293, %294 : vector<5x5xi1>, vector<5x5xf32>
    %cst_48 = arith.constant dense<0xFF800000> : vector<5xf32>
    %296 = vector.multi_reduction <maximumf>, %295, %cst_48 [1] : vector<5x5xf32> to vector<5xf32>
    %297 = vector.shape_cast %296 : vector<5xf32> to vector<5x1xf32>
    %c3_i32_49 = arith.constant 3 : i32
    %298 = vector.broadcast %c3_i32_49 : i32 to vector<1x5xi32>
    %299 = arith.cmpi eq, %265, %298 : vector<1x5xi32>
    %cst_50 = arith.constant 0.000000e+00 : f32
    %cst_51 = arith.constant -1.000000e+08 : f32
    %300 = vector.broadcast %cst_50 : f32 to vector<1x5xf32>
    %301 = vector.broadcast %cst_51 : f32 to vector<1x5xf32>
    %302 = arith.select %299, %300, %301 : vector<1x5xi1>, vector<1x5xf32>
    %303 = vector.broadcast %302 : vector<1x5xf32> to vector<5x5xf32>
    %304 = arith.addf %303, %263 : vector<5x5xf32>
    %cst_52 = arith.constant dense<0xFF800000> : vector<5xf32>
    %305 = vector.multi_reduction <maximumf>, %304, %cst_52 [1] : vector<5x5xf32> to vector<5xf32>
    %306 = vector.shape_cast %305 : vector<5xf32> to vector<5x1xf32>
    %307 = vector.broadcast %306 : vector<5x1xf32> to vector<5x5xf32>
    %308 = arith.cmpf oeq, %304, %307 : vector<5x5xf32>
    %c5_i32_53 = arith.constant 5 : i32
    %309 = vector.broadcast %c5_i32_53 : i32 to vector<5x5xi32>
    %310 = arith.select %308, %267, %309 : vector<5x5xi1>, vector<5x5xi32>
    %cst_54 = arith.constant dense<2147483647> : vector<5xi32>
    %311 = vector.multi_reduction <minsi>, %310, %cst_54 [1] : vector<5x5xi32> to vector<5xi32>
    %312 = vector.shape_cast %311 : vector<5xi32> to vector<5x1xi32>
    %313 = arith.addf %306, %276 : vector<5x1xf32>
    %314 = vector.broadcast %313 : vector<5x1xf32> to vector<5x5xf32>
    %315 = arith.addf %314, %264 : vector<5x5xf32>
    %cst_55 = arith.constant dense<0xFF800000> : vector<5xf32>
    %316 = vector.multi_reduction <maximumf>, %315, %cst_55 [0] : vector<5x5xf32> to vector<5xf32>
    %317 = vector.shape_cast %316 : vector<5xf32> to vector<1x5xf32>
    %318 = vector.broadcast %317 : vector<1x5xf32> to vector<5x5xf32>
    %319 = arith.cmpf oeq, %315, %318 : vector<5x5xf32>
    %c5_i32_56 = arith.constant 5 : i32
    %320 = vector.broadcast %c5_i32_56 : i32 to vector<5x5xi32>
    %321 = arith.select %319, %268, %320 : vector<5x5xi1>, vector<5x5xi32>
    %cst_57 = arith.constant dense<2147483647> : vector<5xi32>
    %322 = vector.multi_reduction <minsi>, %321, %cst_57 [0] : vector<5x5xi32> to vector<5xi32>
    %323 = vector.shape_cast %322 : vector<5xi32> to vector<1x5xi32>
    %324 = vector.extract_strided_slice %262 {offsets = [1, 0], sizes = [1, 5], strides = [1, 1]} : vector<8x5xf32> to vector<1x5xf32>
    %325 = arith.addf %317, %324 : vector<1x5xf32>
    %326 = vector.broadcast %325 : vector<1x5xf32> to vector<5x5xf32>
    %327 = arith.addf %326, %263 : vector<5x5xf32>
    %cst_58 = arith.constant dense<0xFF800000> : vector<5xf32>
    %328 = vector.multi_reduction <maximumf>, %327, %cst_58 [1] : vector<5x5xf32> to vector<5xf32>
    %329 = vector.shape_cast %328 : vector<5xf32> to vector<5x1xf32>
    %330 = vector.broadcast %329 : vector<5x1xf32> to vector<5x5xf32>
    %331 = arith.cmpf oeq, %327, %330 : vector<5x5xf32>
    %c5_i32_59 = arith.constant 5 : i32
    %332 = vector.broadcast %c5_i32_59 : i32 to vector<5x5xi32>
    %333 = arith.select %331, %267, %332 : vector<5x5xi1>, vector<5x5xi32>
    %cst_60 = arith.constant dense<2147483647> : vector<5xi32>
    %334 = vector.multi_reduction <minsi>, %333, %cst_60 [1] : vector<5x5xi32> to vector<5xi32>
    %335 = vector.shape_cast %334 : vector<5xi32> to vector<5x1xi32>
    %336 = arith.addf %329, %283 : vector<5x1xf32>
    %337 = vector.broadcast %336 : vector<5x1xf32> to vector<5x5xf32>
    %338 = arith.addf %337, %264 : vector<5x5xf32>
    %cst_61 = arith.constant dense<0xFF800000> : vector<5xf32>
    %339 = vector.multi_reduction <maximumf>, %338, %cst_61 [0] : vector<5x5xf32> to vector<5xf32>
    %340 = vector.shape_cast %339 : vector<5xf32> to vector<1x5xf32>
    %341 = vector.broadcast %340 : vector<1x5xf32> to vector<5x5xf32>
    %342 = arith.cmpf oeq, %338, %341 : vector<5x5xf32>
    %c5_i32_62 = arith.constant 5 : i32
    %343 = vector.broadcast %c5_i32_62 : i32 to vector<5x5xi32>
    %344 = arith.select %342, %268, %343 : vector<5x5xi1>, vector<5x5xi32>
    %cst_63 = arith.constant dense<2147483647> : vector<5xi32>
    %345 = vector.multi_reduction <minsi>, %344, %cst_63 [0] : vector<5x5xi32> to vector<5xi32>
    %346 = vector.shape_cast %345 : vector<5xi32> to vector<1x5xi32>
    %347 = vector.extract_strided_slice %262 {offsets = [3, 0], sizes = [1, 5], strides = [1, 1]} : vector<8x5xf32> to vector<1x5xf32>
    %348 = arith.addf %340, %347 : vector<1x5xf32>
    %349 = vector.broadcast %348 : vector<1x5xf32> to vector<5x5xf32>
    %350 = arith.addf %349, %263 : vector<5x5xf32>
    %cst_64 = arith.constant dense<0xFF800000> : vector<5xf32>
    %351 = vector.multi_reduction <maximumf>, %350, %cst_64 [1] : vector<5x5xf32> to vector<5xf32>
    %352 = vector.shape_cast %351 : vector<5xf32> to vector<5x1xf32>
    %353 = vector.broadcast %352 : vector<5x1xf32> to vector<5x5xf32>
    %354 = arith.cmpf oeq, %350, %353 : vector<5x5xf32>
    %c5_i32_65 = arith.constant 5 : i32
    %355 = vector.broadcast %c5_i32_65 : i32 to vector<5x5xi32>
    %356 = arith.select %354, %267, %355 : vector<5x5xi1>, vector<5x5xi32>
    %cst_66 = arith.constant dense<2147483647> : vector<5xi32>
    %357 = vector.multi_reduction <minsi>, %356, %cst_66 [1] : vector<5x5xi32> to vector<5xi32>
    %358 = vector.shape_cast %357 : vector<5xi32> to vector<5x1xi32>
    %359 = arith.addf %352, %290 : vector<5x1xf32>
    %360 = vector.broadcast %359 : vector<5x1xf32> to vector<5x5xf32>
    %361 = arith.addf %360, %264 : vector<5x5xf32>
    %cst_67 = arith.constant dense<0xFF800000> : vector<5xf32>
    %362 = vector.multi_reduction <maximumf>, %361, %cst_67 [0] : vector<5x5xf32> to vector<5xf32>
    %363 = vector.shape_cast %362 : vector<5xf32> to vector<1x5xf32>
    %364 = vector.broadcast %363 : vector<1x5xf32> to vector<5x5xf32>
    %365 = arith.cmpf oeq, %361, %364 : vector<5x5xf32>
    %c5_i32_68 = arith.constant 5 : i32
    %366 = vector.broadcast %c5_i32_68 : i32 to vector<5x5xi32>
    %367 = arith.select %365, %268, %366 : vector<5x5xi1>, vector<5x5xi32>
    %cst_69 = arith.constant dense<2147483647> : vector<5xi32>
    %368 = vector.multi_reduction <minsi>, %367, %cst_69 [0] : vector<5x5xi32> to vector<5xi32>
    %369 = vector.shape_cast %368 : vector<5xi32> to vector<1x5xi32>
    %370 = vector.extract_strided_slice %262 {offsets = [5, 0], sizes = [1, 5], strides = [1, 1]} : vector<8x5xf32> to vector<1x5xf32>
    %371 = arith.addf %363, %370 : vector<1x5xf32>
    %372 = vector.broadcast %371 : vector<1x5xf32> to vector<5x5xf32>
    %373 = arith.addf %372, %263 : vector<5x5xf32>
    %cst_70 = arith.constant dense<0xFF800000> : vector<5xf32>
    %374 = vector.multi_reduction <maximumf>, %373, %cst_70 [1] : vector<5x5xf32> to vector<5xf32>
    %375 = vector.shape_cast %374 : vector<5xf32> to vector<5x1xf32>
    %376 = vector.broadcast %375 : vector<5x1xf32> to vector<5x5xf32>
    %377 = arith.cmpf oeq, %373, %376 : vector<5x5xf32>
    %c5_i32_71 = arith.constant 5 : i32
    %378 = vector.broadcast %c5_i32_71 : i32 to vector<5x5xi32>
    %379 = arith.select %377, %267, %378 : vector<5x5xi1>, vector<5x5xi32>
    %cst_72 = arith.constant dense<2147483647> : vector<5xi32>
    %380 = vector.multi_reduction <minsi>, %379, %cst_72 [1] : vector<5x5xi32> to vector<5xi32>
    %381 = vector.shape_cast %380 : vector<5xi32> to vector<5x1xi32>
    %382 = arith.addf %375, %297 : vector<5x1xf32>
    %383 = vector.broadcast %382 : vector<5x1xf32> to vector<5x5xf32>
    %384 = arith.addf %383, %264 : vector<5x5xf32>
    %cst_73 = arith.constant dense<0xFF800000> : vector<5xf32>
    %385 = vector.multi_reduction <maximumf>, %384, %cst_73 [0] : vector<5x5xf32> to vector<5xf32>
    %386 = vector.shape_cast %385 : vector<5xf32> to vector<1x5xf32>
    %387 = vector.broadcast %386 : vector<1x5xf32> to vector<5x5xf32>
    %388 = arith.cmpf oeq, %384, %387 : vector<5x5xf32>
    %c5_i32_74 = arith.constant 5 : i32
    %389 = vector.broadcast %c5_i32_74 : i32 to vector<5x5xi32>
    %390 = arith.select %388, %268, %389 : vector<5x5xi1>, vector<5x5xi32>
    %cst_75 = arith.constant dense<2147483647> : vector<5xi32>
    %391 = vector.multi_reduction <minsi>, %390, %cst_75 [0] : vector<5x5xi32> to vector<5xi32>
    %392 = vector.shape_cast %391 : vector<5xi32> to vector<1x5xi32>
    %393 = vector.extract_strided_slice %262 {offsets = [7, 0], sizes = [1, 5], strides = [1, 1]} : vector<8x5xf32> to vector<1x5xf32>
    %394 = arith.addf %386, %393 : vector<1x5xf32>
    %395 = vector.extract_strided_slice %263 {offsets = [4, 0], sizes = [1, 5], strides = [1, 1]} : vector<5x5xf32> to vector<1x5xf32>
    %396 = arith.addf %394, %395 : vector<1x5xf32>
    %cst_76 = arith.constant dense<0xFF800000> : vector<1xf32>
    %397 = vector.multi_reduction <maximumf>, %396, %cst_76 [1] : vector<1x5xf32> to vector<1xf32>
    %398 = vector.shape_cast %397 : vector<1xf32> to vector<1x1xf32>
    %399 = vector.broadcast %398 : vector<1x1xf32> to vector<1x5xf32>
    %400 = arith.cmpf oeq, %396, %399 : vector<1x5xf32>
    %c5_i32_77 = arith.constant 5 : i32
    %401 = vector.broadcast %c5_i32_77 : i32 to vector<1x5xi32>
    %402 = arith.select %400, %265, %401 : vector<1x5xi1>, vector<1x5xi32>
    %cst_78 = arith.constant dense<2147483647> : vector<1xi32>
    %403 = vector.multi_reduction <minsi>, %402, %cst_78 [1] : vector<1x5xi32> to vector<1xi32>
    %404 = vector.shape_cast %403 : vector<1xi32> to vector<1x1xi32>
    %405 = vector.broadcast %404 : vector<1x1xi32> to vector<1x5xi32>
    %406 = arith.cmpi eq, %265, %405 : vector<1x5xi32>
    %c0_i32_79 = arith.constant 0 : i32
    %407 = vector.broadcast %c0_i32_79 : i32 to vector<1x5xi32>
    %408 = arith.select %406, %392, %407 : vector<1x5xi1>, vector<1x5xi32>
    %cst_80 = arith.constant dense<0> : vector<1xi32>
    %409 = vector.multi_reduction <add>, %408, %cst_80 [1] : vector<1x5xi32> to vector<1xi32>
    %410 = vector.shape_cast %409 : vector<1xi32> to vector<1x1xi32>
    %411 = vector.broadcast %410 : vector<1x1xi32> to vector<5x1xi32>
    %412 = arith.cmpi eq, %266, %411 : vector<5x1xi32>
    %c0_i32_81 = arith.constant 0 : i32
    %413 = vector.broadcast %c0_i32_81 : i32 to vector<5x1xi32>
    %414 = arith.select %412, %381, %413 : vector<5x1xi1>, vector<5x1xi32>
    %cst_82 = arith.constant dense<0> : vector<1xi32>
    %415 = vector.multi_reduction <add>, %414, %cst_82 [0] : vector<5x1xi32> to vector<1xi32>
    %416 = vector.shape_cast %415 : vector<1xi32> to vector<1x1xi32>
    %417 = vector.broadcast %416 : vector<1x1xi32> to vector<1x5xi32>
    %418 = arith.cmpi eq, %265, %417 : vector<1x5xi32>
    %c0_i32_83 = arith.constant 0 : i32
    %419 = vector.broadcast %c0_i32_83 : i32 to vector<1x5xi32>
    %420 = arith.select %418, %369, %419 : vector<1x5xi1>, vector<1x5xi32>
    %cst_84 = arith.constant dense<0> : vector<1xi32>
    %421 = vector.multi_reduction <add>, %420, %cst_84 [1] : vector<1x5xi32> to vector<1xi32>
    %422 = vector.shape_cast %421 : vector<1xi32> to vector<1x1xi32>
    %423 = vector.broadcast %422 : vector<1x1xi32> to vector<5x1xi32>
    %424 = arith.cmpi eq, %266, %423 : vector<5x1xi32>
    %c0_i32_85 = arith.constant 0 : i32
    %425 = vector.broadcast %c0_i32_85 : i32 to vector<5x1xi32>
    %426 = arith.select %424, %358, %425 : vector<5x1xi1>, vector<5x1xi32>
    %cst_86 = arith.constant dense<0> : vector<1xi32>
    %427 = vector.multi_reduction <add>, %426, %cst_86 [0] : vector<5x1xi32> to vector<1xi32>
    %428 = vector.shape_cast %427 : vector<1xi32> to vector<1x1xi32>
    %429 = vector.broadcast %428 : vector<1x1xi32> to vector<1x5xi32>
    %430 = arith.cmpi eq, %265, %429 : vector<1x5xi32>
    %c0_i32_87 = arith.constant 0 : i32
    %431 = vector.broadcast %c0_i32_87 : i32 to vector<1x5xi32>
    %432 = arith.select %430, %346, %431 : vector<1x5xi1>, vector<1x5xi32>
    %cst_88 = arith.constant dense<0> : vector<1xi32>
    %433 = vector.multi_reduction <add>, %432, %cst_88 [1] : vector<1x5xi32> to vector<1xi32>
    %434 = vector.shape_cast %433 : vector<1xi32> to vector<1x1xi32>
    %435 = vector.broadcast %434 : vector<1x1xi32> to vector<5x1xi32>
    %436 = arith.cmpi eq, %266, %435 : vector<5x1xi32>
    %c0_i32_89 = arith.constant 0 : i32
    %437 = vector.broadcast %c0_i32_89 : i32 to vector<5x1xi32>
    %438 = arith.select %436, %335, %437 : vector<5x1xi1>, vector<5x1xi32>
    %cst_90 = arith.constant dense<0> : vector<1xi32>
    %439 = vector.multi_reduction <add>, %438, %cst_90 [0] : vector<5x1xi32> to vector<1xi32>
    %440 = vector.shape_cast %439 : vector<1xi32> to vector<1x1xi32>
    %441 = vector.broadcast %440 : vector<1x1xi32> to vector<1x5xi32>
    %442 = arith.cmpi eq, %265, %441 : vector<1x5xi32>
    %c0_i32_91 = arith.constant 0 : i32
    %443 = vector.broadcast %c0_i32_91 : i32 to vector<1x5xi32>
    %444 = arith.select %442, %323, %443 : vector<1x5xi1>, vector<1x5xi32>
    %cst_92 = arith.constant dense<0> : vector<1xi32>
    %445 = vector.multi_reduction <add>, %444, %cst_92 [1] : vector<1x5xi32> to vector<1xi32>
    %446 = vector.shape_cast %445 : vector<1xi32> to vector<1x1xi32>
    %447 = vector.broadcast %446 : vector<1x1xi32> to vector<5x1xi32>
    %448 = arith.cmpi eq, %266, %447 : vector<5x1xi32>
    %c0_i32_93 = arith.constant 0 : i32
    %449 = vector.broadcast %c0_i32_93 : i32 to vector<5x1xi32>
    %450 = arith.select %448, %312, %449 : vector<5x1xi1>, vector<5x1xi32>
    %cst_94 = arith.constant dense<0> : vector<1xi32>
    %451 = vector.multi_reduction <add>, %450, %cst_94 [0] : vector<5x1xi32> to vector<1xi32>
    %452 = vector.shape_cast %451 : vector<1xi32> to vector<1x1xi32>
    %453 = tpu.iota {dimensions = array<i32: 1>} : vector<1x9xi32>
    %c0_i32_95 = arith.constant 0 : i32
    %454 = vector.broadcast %c0_i32_95 : i32 to vector<1x9xi32>
    %455 = arith.cmpi eq, %453, %454 : vector<1x9xi32>
    %c0_i32_96 = arith.constant 0 : i32
    %456 = vector.broadcast %c0_i32_96 : i32 to vector<1x9xi32>
    %457 = vector.shape_cast %452 : vector<1x1xi32> to vector<1x1xi32>
    %458 = vector.broadcast %457 : vector<1x1xi32> to vector<1x9xi32>
    %459 = arith.select %455, %458, %456 : vector<1x9xi1>, vector<1x9xi32>
    %c1_i32_97 = arith.constant 1 : i32
    %460 = vector.broadcast %c1_i32_97 : i32 to vector<1x9xi32>
    %461 = arith.cmpi eq, %453, %460 : vector<1x9xi32>
    %462 = vector.shape_cast %446 : vector<1x1xi32> to vector<1x1xi32>
    %463 = vector.broadcast %462 : vector<1x1xi32> to vector<1x9xi32>
    %464 = arith.select %461, %463, %459 : vector<1x9xi1>, vector<1x9xi32>
    %c2_i32_98 = arith.constant 2 : i32
    %465 = vector.broadcast %c2_i32_98 : i32 to vector<1x9xi32>
    %466 = arith.cmpi eq, %453, %465 : vector<1x9xi32>
    %467 = vector.shape_cast %440 : vector<1x1xi32> to vector<1x1xi32>
    %468 = vector.broadcast %467 : vector<1x1xi32> to vector<1x9xi32>
    %469 = arith.select %466, %468, %464 : vector<1x9xi1>, vector<1x9xi32>
    %c3_i32_99 = arith.constant 3 : i32
    %470 = vector.broadcast %c3_i32_99 : i32 to vector<1x9xi32>
    %471 = arith.cmpi eq, %453, %470 : vector<1x9xi32>
    %472 = vector.shape_cast %434 : vector<1x1xi32> to vector<1x1xi32>
    %473 = vector.broadcast %472 : vector<1x1xi32> to vector<1x9xi32>
    %474 = arith.select %471, %473, %469 : vector<1x9xi1>, vector<1x9xi32>
    %c4_i32_100 = arith.constant 4 : i32
    %475 = vector.broadcast %c4_i32_100 : i32 to vector<1x9xi32>
    %476 = arith.cmpi eq, %453, %475 : vector<1x9xi32>
    %477 = vector.shape_cast %428 : vector<1x1xi32> to vector<1x1xi32>
    %478 = vector.broadcast %477 : vector<1x1xi32> to vector<1x9xi32>
    %479 = arith.select %476, %478, %474 : vector<1x9xi1>, vector<1x9xi32>
    %c5_i32_101 = arith.constant 5 : i32
    %480 = vector.broadcast %c5_i32_101 : i32 to vector<1x9xi32>
    %481 = arith.cmpi eq, %453, %480 : vector<1x9xi32>
    %482 = vector.shape_cast %422 : vector<1x1xi32> to vector<1x1xi32>
    %483 = vector.broadcast %482 : vector<1x1xi32> to vector<1x9xi32>
    %484 = arith.select %481, %483, %479 : vector<1x9xi1>, vector<1x9xi32>
    %c6_i32_102 = arith.constant 6 : i32
    %485 = vector.broadcast %c6_i32_102 : i32 to vector<1x9xi32>
    %486 = arith.cmpi eq, %453, %485 : vector<1x9xi32>
    %487 = vector.shape_cast %416 : vector<1x1xi32> to vector<1x1xi32>
    %488 = vector.broadcast %487 : vector<1x1xi32> to vector<1x9xi32>
    %489 = arith.select %486, %488, %484 : vector<1x9xi1>, vector<1x9xi32>
    %c7_i32_103 = arith.constant 7 : i32
    %490 = vector.broadcast %c7_i32_103 : i32 to vector<1x9xi32>
    %491 = arith.cmpi eq, %453, %490 : vector<1x9xi32>
    %492 = vector.shape_cast %410 : vector<1x1xi32> to vector<1x1xi32>
    %493 = vector.broadcast %492 : vector<1x1xi32> to vector<1x9xi32>
    %494 = arith.select %491, %493, %489 : vector<1x9xi1>, vector<1x9xi32>
    %c8_i32 = arith.constant 8 : i32
    %495 = vector.broadcast %c8_i32 : i32 to vector<1x9xi32>
    %496 = arith.cmpi eq, %453, %495 : vector<1x9xi32>
    %497 = vector.shape_cast %404 : vector<1x1xi32> to vector<1x1xi32>
    %498 = vector.broadcast %497 : vector<1x1xi32> to vector<1x9xi32>
    %499 = arith.select %496, %498, %494 : vector<1x9xi1>, vector<1x9xi32>
    %c0_104 = arith.constant 0 : index
    %c0_105 = arith.constant 0 : index
    %500 = vector.load %arg10[%c0_104, %c0_105] : memref<1x1xf32, #tpu.memory_space<vmem>>, vector<1x1xf32>
    tpu.vector_store %arg10[%c0_104, %c0_105], %398 {strides = array<i32>} : memref<1x1xf32, #tpu.memory_space<vmem>>, vector<1x1xf32>,
    %c0_106 = arith.constant 0 : index
    %c0_107 = arith.constant 0 : index
    %501 = vector.load %arg11[%c0_106, %c0_107] : memref<1x9xi32, #tpu.memory_space<vmem>>, vector<1x9xi32>
    tpu.vector_store %arg11[%c0_106, %c0_107], %499 {strides = array<i32>} : memref<1x9xi32, #tpu.memory_space<vmem>>, vector<1x9xi32>,
    return
  }
}

</mosaic_0001>

<llo_original>
// kernel: tpu_custom_call.1
$region0: #{tpu_custom_call.1}
  #allocation0 [shape = 'u32[]', space=smem, size = 0x4, offset = 0x4, fixed_abs, tag = 'smem constant byte address 0x4 - core index']
  #allocation1 [shape = 'u32[144,128]{1,0:T(1,128)}', space=vmem, size = 0x12000, scoped, tag = 'internal scratch']
  %s0 = inlined_call_operand.vmem [shape: f32[8,16], index: 0, kind: input, shape index: {}]
  %s1 = inlined_call_operand.hbm [shape: f32[16,128], index: 1, kind: input, shape index: {}]
  %s2 = inlined_call_operand.vmem [shape: f32[32,128], index: 2, kind: input, shape index: {}]
  %s3 = inlined_call_operand.vmem [shape: f32[1,128], index: 3, kind: input, shape index: {}]
  %s4 = inlined_call_operand.vmem [shape: f32[1,128], index: 4, kind: input, shape index: {}]
  %s5 = inlined_call_operand.hbm [shape: f32[1,128], index: 5, kind: input, shape index: {}]
  %s6 = inlined_call_operand.vmem [shape: f32[32,5], index: 6, kind: input, shape index: {}]
  %s7 = inlined_call_operand.hbm [shape: f32[1,5], index: 7, kind: input, shape index: {}]
  %s8 = inlined_call_operand.vmem [shape: f32[5,5], index: 8, kind: input, shape index: {}]
  %s9 = inlined_call_operand.vmem [shape: f32[5,5], index: 9, kind: input, shape index: {}]
  %s10 = inlined_call_operand.hbm [shape: f32[1,1], index: 10, kind: output, shape index: {0}]
  %s11 = inlined_call_operand.hbm [shape: s32[1,9], index: 11, kind: output, shape index: {1}]
  %12 = xla_tuple %s10, %s11
  %s13 = sld [smem:[#allocation0]]
  $region70: #{tpu_custom_call.1} parent=0
    _
  %s15 = ssub.s32 1, %s13
  %s16 = scalar_select 0, %s15, %s13
  $region1: #{tpu_custom_call.1} parent=0
    #allocation2 [shape = 'u8[8192]{0}', space=vmem, size = 0x2000, scoped, tag = 'input window, operand 1, single buffered']
    #allocation3 [shape = 's32[1]{0}', space=sflag, size = 0x4, scoped, tag = 'scoped memory for tpu_custom_call.1']
    #allocation4 [shape = 's32[1]{0}', space=sflag, size = 0x4, scoped, tag = 'scoped memory for tpu_custom_call.1']
    #allocation5 [shape = 'u8[512]{0}', space=vmem, size = 0x400, scoped, tag = 'input window, operand 5, single buffered']
    #allocation6 [shape = 's32[1]{0}', space=sflag, size = 0x4, scoped, tag = 'scoped memory for tpu_custom_call.1']
    #allocation7 [shape = 'u8[512]{0}', space=vmem, size = 0x400, scoped, tag = 'input window, operand 7, single buffered']
    #allocation8 [shape = 'u8[512]{0}', space=vmem, size = 0x400, scoped, tag = 'output window, operand 0, single buffered']
    #allocation9 [shape = 'u8[512]{0}', space=vmem, size = 0x400, scoped, tag = 'output window, operand 1, single buffered']
    #allocation10 [shape = 's32[1]{0}', space=sflag, size = 0x4, scoped, tag = 'scoped memory for tpu_custom_call.1']
    %17 = vsyncpa [#allocation3], 0
    %18 = vsyncpa [#allocation6], 0
    %19 = vsyncpa [#allocation4], 0
    %20 = vsyncpa [#allocation10], 0
    // Predicated region
    $region2: #{tpu_custom_call.1} parent=1 // pred_check
      _
    $region3: #{tpu_custom_call.1} parent=1 // pred_check_branch
      %22 = sbr.rel (0) target = $region5
    $region4: #{tpu_custom_call.1} parent=1 // pred_region
      _
    $region5: #{tpu_custom_call.1} parent=1 // pred_fallthru
      _
    // Predicated region
    $region6: #{tpu_custom_call.1} parent=1 // pred_check
      _
    $region7: #{tpu_custom_call.1} parent=1 // pred_check_branch
      %24 = sbr.rel (0) target = $region9
    $region8: #{tpu_custom_call.1} parent=1 // pred_region
      %s26 = ssub.s32 256, 256
      %27 = vsyncadd [#allocation3], %s26
      %s28 = sshll.u32 [#allocation2], 4
      %s29 = int_to_ptr.vmem [resolvable:$true] %s28
      %34 = dma.hbm_to_vmem [thread:$0]  %s1, 256, %s29, [#allocation3], 128, 128, 8
    $region9: #{tpu_custom_call.1} parent=1 // pred_fallthru
      _
    // Predicated region
    $region10: #{tpu_custom_call.1} parent=1 // pred_check
      _
    $region11: #{tpu_custom_call.1} parent=1 // pred_check_branch
      %36 = sbr.rel (0) target = $region13
    $region12: #{tpu_custom_call.1} parent=1 // pred_region
      _
    $region13: #{tpu_custom_call.1} parent=1 // pred_fallthru
      _
    // Predicated region
    $region14: #{tpu_custom_call.1} parent=1 // pred_check
      _
    $region15: #{tpu_custom_call.1} parent=1 // pred_check_branch
      %38 = sbr.rel (0) target = $region17
    $region16: #{tpu_custom_call.1} parent=1 // pred_region
      _
    $region17: #{tpu_custom_call.1} parent=1 // pred_fallthru
      _
    // Predicated region
    $region18: #{tpu_custom_call.1} parent=1 // pred_check
      _
    $region19: #{tpu_custom_call.1} parent=1 // pred_check_branch
      %40 = sbr.rel (0) target = $region21
    $region20: #{tpu_custom_call.1} parent=1 // pred_region
      _
    $region21: #{tpu_custom_call.1} parent=1 // pred_fallthru
      _
    // Predicated region
    $region22: #{tpu_custom_call.1} parent=1 // pred_check
      _
    $region23: #{tpu_custom_call.1} parent=1 // pred_check_branch
      %42 = sbr.rel (0) target = $region25
    $region24: #{tpu_custom_call.1} parent=1 // pred_region
      %s44 = ssub.s32 16, 16
      %45 = vsyncadd [#allocation6], %s44
      %s47 = sshll.u32 [#allocation5], 4
      %s48 = int_to_ptr.vmem [resolvable:$true] %s47
      %50 = dma.hbm_to_vmem [thread:$0]  %s5, 16, %s48, [#allocation6]
    $region25: #{tpu_custom_call.1} parent=1 // pred_fallthru
      _
    // Predicated region
    $region26: #{tpu_custom_call.1} parent=1 // pred_check
      _
    $region27: #{tpu_custom_call.1} parent=1 // pred_check_branch
      %52 = sbr.rel (0) target = $region29
    $region28: #{tpu_custom_call.1} parent=1 // pred_region
      _
    $region29: #{tpu_custom_call.1} parent=1 // pred_fallthru
      _
    // Predicated region
    $region30: #{tpu_custom_call.1} parent=1 // pred_check
      _
    $region31: #{tpu_custom_call.1} parent=1 // pred_check_branch
      %54 = sbr.rel (0) target = $region33
    $region32: #{tpu_custom_call.1} parent=1 // pred_region
      %s56 = ssub.s32 16, 16
      %57 = vsyncadd [#allocation6], %s56
      %s59 = sshll.u32 [#allocation7], 4
      %s60 = int_to_ptr.vmem [resolvable:$true] %s59
      %62 = dma.hbm_to_vmem [thread:$0]  %s7, 16, %s60, [#allocation6]
    $region33: #{tpu_custom_call.1} parent=1 // pred_fallthru
      _
    // Predicated region
    $region34: #{tpu_custom_call.1} parent=1 // pred_check
      _
    $region35: #{tpu_custom_call.1} parent=1 // pred_check_branch
      %64 = sbr.rel (0) target = $region37
    $region36: #{tpu_custom_call.1} parent=1 // pred_region
      _
    $region37: #{tpu_custom_call.1} parent=1 // pred_fallthru
      _
    // Predicated region
    $region38: #{tpu_custom_call.1} parent=1 // pred_check
      _
    $region39: #{tpu_custom_call.1} parent=1 // pred_check_branch
      %66 = sbr.rel (0) target = $region41
    $region40: #{tpu_custom_call.1} parent=1 // pred_region
      _
    $region41: #{tpu_custom_call.1} parent=1 // pred_fallthru
      _
    // Predicated region
    $region42: #{tpu_custom_call.1} parent=1 // pred_check
      _
    $region43: #{tpu_custom_call.1} parent=1 // pred_check_branch
      %68 = sbr.rel (0) target = $region45
    $region44: #{tpu_custom_call.1} parent=1 // pred_region
      %69 = dma.done [#allocation3], 256
    $region45: #{tpu_custom_call.1} parent=1 // pred_fallthru
      _
    // Predicated region
    $region46: #{tpu_custom_call.1} parent=1 // pred_check
      _
    $region47: #{tpu_custom_call.1} parent=1 // pred_check_branch
      %71 = sbr.rel (0) target = $region49
    $region48: #{tpu_custom_call.1} parent=1 // pred_region
      %72 = dma.done [#allocation6], 16
    $region49: #{tpu_custom_call.1} parent=1 // pred_fallthru
      _
    // Predicated region
    $region50: #{tpu_custom_call.1} parent=1 // pred_check
      _
    $region51: #{tpu_custom_call.1} parent=1 // pred_check_branch
      %74 = sbr.rel (0) target = $region53
    $region52: #{tpu_custom_call.1} parent=1 // pred_region
      %75 = dma.done [#allocation6], 16
    $region53: #{tpu_custom_call.1} parent=1 // pred_fallthru
      _
    %v76 = vld [vmem:[%s0] sm:$0xff]
    %v77 = vld [vmem:[#allocation2] sm:$0xff]
    %v78 = vld [vmem:[#allocation2 + $0x8] sm:$0xff]
    %v79 = vld [vmem:[%s3] sm:$0x1]
    %v81 = vlaneseq
    %v82 = vshrl.u32 %v81, 7
    %v83 = vsub.s32 0, %v82
    %v84 = vrot.slane %v79, %v83
    %vm86 = vcmask 130048
    %v88 = vsel %vm86, %v76, 0
    %90 = vmatprep.subr.mxu0 0.0
    %91 = vmatpush1.msra.mxu0 %v77
    %92 = vmatprep.subr.mxu0 0.0
    %93 = vmatpush1.msra.mxu0 %v78
    %94 = vmatprep.subr.mxu0 0.0
    %95 = vmatpush1.msra.mxu0 0.0
    %96 = vmatprep.subr.mxu0 0.0
    %97 = vmatpush1.msra.mxu0 0.0
    %98 = vmatprep.subr.mxu0 0.0
    %99 = vmatpush1.msra.mxu0 0.0
    %100 = vmatprep.subr.mxu0 0.0
    %101 = vmatpush1.msra.mxu0 0.0
    %102 = vmatprep.subr.mxu0 0.0
    %103 = vmatpush1.msra.mxu0 0.0
    %104 = vmatprep.subr.mxu0 0.0
    %105 = vmatpush1.msra.mxu0 0.0
    %106 = vmatprep.subr.mxu0 0.0
    %107 = vmatpush1.msra.mxu0 0.0
    %108 = vmatprep.subr.mxu0 0.0
    %109 = vmatpush1.msra.mxu0 0.0
    %110 = vmatprep.subr.mxu0 0.0
    %111 = vmatpush1.msra.mxu0 0.0
    %112 = vmatprep.subr.mxu0 0.0
    %113 = vmatpush1.msra.mxu0 0.0
    %114 = vmatprep.subr.mxu0 0.0
    %115 = vmatpush1.msra.mxu0 0.0
    %116 = vmatprep.subr.mxu0 0.0
    %117 = vmatpush1.msra.mxu0 0.0
    %118 = vmatprep.subr.mxu0 0.0
    %119 = vmatpush1.msra.mxu0 0.0
    %120 = vmatprep.subr.mxu0 0.0
    %121 = vmatpush1.msra.mxu0 0.0
    %122 = vmatprep.subr.mxu0 0.0
    %123 = vmatpush1.msra.mxu0 0.0
    %124 = vmatprep.subr.mxu0 0.0
    %125 = vmatpush1.msra.mxu0 0.0
    %126 = vmatprep.subr.mxu0 0.0
    %127 = vmatpush1.msra.mxu0 0.0
    %128 = vmatprep.subr.mxu0 0.0
    %129 = vmatpush1.msra.mxu0 0.0
    %130 = vmatprep.subr.mxu0 0.0
    %131 = vmatpush1.msra.mxu0 0.0
    %132 = vmatprep.subr.mxu0 0.0
    %133 = vmatpush1.msra.mxu0 0.0
    %134 = vmatprep.subr.mxu0 0.0
    %135 = vmatpush1.msra.mxu0 0.0
    %136 = vmatprep.subr.mxu0 0.0
    %137 = vmatpush1.msra.mxu0 0.0
    %138 = vmatprep.subr.mxu0 0.0
    %139 = vmatpush1.msra.mxu0 0.0
    %140 = vmatprep.subr.mxu0 0.0
    %141 = vmatpush1.msra.mxu0 0.0
    %142 = vmatprep.subr.mxu0 0.0
    %143 = vmatpush1.msra.mxu0 0.0
    %144 = vmatprep.subr.mxu0 0.0
    %145 = vmatpush1.msra.mxu0 0.0
    %146 = vmatprep.subr.mxu0 0.0
    %147 = vmatpush1.msra.mxu0 0.0
    %148 = vmatprep.subr.mxu0 0.0
    %149 = vmatpush1.msra.mxu0 0.0
    %150 = vmatprep.subr.mxu0 0.0
    %151 = vmatpush1.msra.mxu0 0.0
    %152 = vmatprep.subr.mxu0 0.0
    %153 = vmatpush1.msra.mxu0 0.0
    %154 = vmatprep.mubr.f32.mxu0 0.0
    %155 = vmatmul.mubr.f32.gmra.mrb[0].mxu0 %v88
    %v156 = vpop.f32.mrb[0].mxu0
    %v157 = vadd.f32 %v84, %v156
    %v158 = vpop.f32.mrb[0].mxu0
    %159 = vdwg.mxu0
    %v160 = vlaneseq
    %v161 = vand.u32 %v160, 127
    %vm162 = vcmp.ge.s32.totalorder %v161, 0
    %vm163 = vcmp.lt.s32.totalorder %v161, 16
    %vm164 = vmand %vm162, %vm163
    %vm165 = vcmp.ge.s32.totalorder %v161, 32
    %vm166 = vcmp.lt.s32.totalorder %v161, 48
    %vm167 = vmand %vm165, %vm166
    %vm168 = vmor %vm164, %vm167
    %vm169 = vcmp.ge.s32.totalorder %v161, 64
    %vm170 = vcmp.lt.s32.totalorder %v161, 80
    %vm171 = vmand %vm169, %vm170
    %vm172 = vmor %vm168, %vm171
    %vm173 = vcmp.ge.s32.totalorder %v161, 96
    %vm174 = vcmp.lt.s32.totalorder %v161, 112
    %vm175 = vmand %vm173, %vm174
    %vm176 = vmor %vm172, %vm175
    %v178 = vrot.slane %v157, 7
    %v180 = vsel %vm176, %v157, %v178
    %v181 = vrot.slane %v157, 5
    %v183 = vsel %vm176, %v157, %v181
    %v184 = vrot.slane %v157, 3
    %v186 = vsel %vm176, %v157, %v184
    %v187 = vrot.slane %v157, 1
    %v189 = vsel %vm176, %v157, %v187
    %v190 = vld [vmem:[%s2] sm:$0xff]
    %v191 = vld [vmem:[%s2 + $0x8] sm:$0xff]
    %v192 = vld [vmem:[%s2 + $0x10] sm:$0xff]
    %v193 = vld [vmem:[%s2 + $0x18] sm:$0xff]
    %v194 = vld [vmem:[%s4] sm:$0x1]
    %v195 = vld [vmem:[#allocation5] sm:$0x1]
    %vm196 = vcmask 261120
    %v198 = vsel %vm196, 0.0, 0
    %200 = vmatprep.subr.mxu0 0.0
    %201 = vmatpush1.msra.mxu0 %v190
    %202 = vmatprep.subr.mxu0 0.0
    %203 = vmatpush1.msra.mxu0 %v191
    %204 = vmatprep.subr.mxu0 0.0
    %205 = vmatpush1.msra.mxu0 %v192
    %206 = vmatprep.subr.mxu0 0.0
    %207 = vmatpush1.msra.mxu0 %v193
    %208 = vmatprep.subr.mxu0 0.0
    %209 = vmatpush1.msra.mxu0 0.0
    %210 = vmatprep.subr.mxu0 0.0
    %211 = vmatpush1.msra.mxu0 0.0
    %212 = vmatprep.subr.mxu0 0.0
    %213 = vmatpush1.msra.mxu0 0.0
    %214 = vmatprep.subr.mxu0 0.0
    %215 = vmatpush1.msra.mxu0 0.0
    %216 = vmatprep.subr.mxu0 0.0
    %217 = vmatpush1.msra.mxu0 0.0
    %218 = vmatprep.subr.mxu0 0.0
    %219 = vmatpush1.msra.mxu0 0.0
    %220 = vmatprep.subr.mxu0 0.0
    %221 = vmatpush1.msra.mxu0 0.0
    %222 = vmatprep.subr.mxu0 0.0
    %223 = vmatpush1.msra.mxu0 0.0
    %224 = vmatprep.subr.mxu0 0.0
    %225 = vmatpush1.msra.mxu0 0.0
    %226 = vmatprep.subr.mxu0 0.0
    %227 = vmatpush1.msra.mxu0 0.0
    %228 = vmatprep.subr.mxu0 0.0
    %229 = vmatpush1.msra.mxu0 0.0
    %230 = vmatprep.subr.mxu0 0.0
    %231 = vmatpush1.msra.mxu0 0.0
    %232 = vmatprep.subr.mxu0 0.0
    %233 = vmatpush1.msra.mxu0 0.0
    %234 = vmatprep.subr.mxu0 0.0
    %235 = vmatpush1.msra.mxu0 0.0
    %236 = vmatprep.subr.mxu0 0.0
    %237 = vmatpush1.msra.mxu0 0.0
    %238 = vmatprep.subr.mxu0 0.0
    %239 = vmatpush1.msra.mxu0 0.0
    %240 = vmatprep.subr.mxu0 0.0
    %241 = vmatpush1.msra.mxu0 0.0
    %242 = vmatprep.subr.mxu0 0.0
    %243 = vmatpush1.msra.mxu0 0.0
    %244 = vmatprep.subr.mxu0 0.0
    %245 = vmatpush1.msra.mxu0 0.0
    %246 = vmatprep.subr.mxu0 0.0
    %247 = vmatpush1.msra.mxu0 0.0
    %248 = vmatprep.subr.mxu0 0.0
    %249 = vmatpush1.msra.mxu0 0.0
    %250 = vmatprep.subr.mxu0 0.0
    %251 = vmatpush1.msra.mxu0 0.0
    %252 = vmatprep.subr.mxu0 0.0
    %253 = vmatpush1.msra.mxu0 0.0
    %254 = vmatprep.subr.mxu0 0.0
    %255 = vmatpush1.msra.mxu0 0.0
    %256 = vmatprep.subr.mxu0 0.0
    %257 = vmatpush1.msra.mxu0 0.0
    %258 = vmatprep.subr.mxu0 0.0
    %259 = vmatpush1.msra.mxu0 0.0
    %260 = vmatprep.subr.mxu0 0.0
    %261 = vmatpush1.msra.mxu0 0.0
    %262 = vmatprep.subr.mxu0 0.0
    %263 = vmatpush1.msra.mxu0 0.0
    %264 = vmatprep.mubr.f32.mxu0 0.0
    %265 = vmatmul.mubr.f32.gmra.mrb[0].mxu0 %v198
    %v266 = vpop.f32.mrb[0].mxu0
    %v267 = vadd.f32 0.0, %v266
    %v268 = vpop.f32.mrb[0].mxu0
    %269 = vdwg.mxu0
    %v270 = vadd.f32 %v180, %v267
    %v271 = vxor.u32 %v270, 2147483648
    %v272 = vmul.f32 %v271, 1.442695
    %v273 = vpow.pop %v272
    %v274 = vadd.f32 %v273, 1.0
    %v275 = vrcp.pop %v274
    %v276 = vmul.f32 1.0, %v275
    %v277 = vmul.f32 %v276, %v194
    %v278 = vsub.f32 %v277, %v195
    %v279 = vmul.f32 %v278, 0.0
    %281 = vrot.lane.b32.xlu0 %v278, 64
    %v282 = vpop.permute.xlu0 %281
    %v284 = vmul.f32 %v278, %v282
    %286 = vrot.lane.b32.xlu0 %v284, 32
    %v287 = vpop.permute.xlu0 %286
    %v289 = vadd.f32 %v279, %v287
    %v290 = vtanh.pop %v289
    %292 = vrot.lane.b32.xlu0 %v290, 64
    %v293 = vpop.permute.xlu0 %292
    %v295 = vmul.f32 %v278, %v293
    %297 = vrot.lane.b32.xlu0 %v295, 32
    %v298 = vpop.permute.xlu0 %297
    %v299 = vsel %vm196, %v298, 0
    %301 = vmatprep.subr.mxu0 0.0
    %302 = vmatpush1.msra.mxu0 %v190
    %303 = vmatprep.subr.mxu0 0.0
    %304 = vmatpush1.msra.mxu0 %v191
    %305 = vmatprep.subr.mxu0 0.0
    %306 = vmatpush1.msra.mxu0 %v192
    %307 = vmatprep.subr.mxu0 0.0
    %308 = vmatpush1.msra.mxu0 %v193
    %309 = vmatprep.subr.mxu0 0.0
    %310 = vmatpush1.msra.mxu0 0.0
    %311 = vmatprep.subr.mxu0 0.0
    %312 = vmatpush1.msra.mxu0 0.0
    %313 = vmatprep.subr.mxu0 0.0
    %314 = vmatpush1.msra.mxu0 0.0
    %315 = vmatprep.subr.mxu0 0.0
    %316 = vmatpush1.msra.mxu0 0.0
    %317 = vmatprep.subr.mxu0 0.0
    %318 = vmatpush1.msra.mxu0 0.0
    %319 = vmatprep.subr.mxu0 0.0
    %320 = vmatpush1.msra.mxu0 0.0
    %321 = vmatprep.subr.mxu0 0.0
    %322 = vmatpush1.msra.mxu0 0.0
    %323 = vmatprep.subr.mxu0 0.0
    %324 = vmatpush1.msra.mxu0 0.0
    %325 = vmatprep.subr.mxu0 0.0
    %326 = vmatpush1.msra.mxu0 0.0
    %327 = vmatprep.subr.mxu0 0.0
    %328 = vmatpush1.msra.mxu0 0.0
    %329 = vmatprep.subr.mxu0 0.0
    %330 = vmatpush1.msra.mxu0 0.0
    %331 = vmatprep.subr.mxu0 0.0
    %332 = vmatpush1.msra.mxu0 0.0
    %333 = vmatprep.subr.mxu0 0.0
    %334 = vmatpush1.msra.mxu0 0.0
    %335 = vmatprep.subr.mxu0 0.0
    %336 = vmatpush1.msra.mxu0 0.0
    %337 = vmatprep.subr.mxu0 0.0
    %338 = vmatpush1.msra.mxu0 0.0
    %339 = vmatprep.subr.mxu0 0.0
    %340 = vmatpush1.msra.mxu0 0.0
    %341 = vmatprep.subr.mxu0 0.0
    %342 = vmatpush1.msra.mxu0 0.0
    %343 = vmatprep.subr.mxu0 0.0
    %344 = vmatpush1.msra.mxu0 0.0
    %345 = vmatprep.subr.mxu0 0.0
    %346 = vmatpush1.msra.mxu0 0.0
    %347 = vmatprep.subr.mxu0 0.0
    %348 = vmatpush1.msra.mxu0 0.0
    %349 = vmatprep.subr.mxu0 0.0
    %350 = vmatpush1.msra.mxu0 0.0
    %351 = vmatprep.subr.mxu0 0.0
    %352 = vmatpush1.msra.mxu0 0.0
    %353 = vmatprep.subr.mxu0 0.0
    %354 = vmatpush1.msra.mxu0 0.0
    %355 = vmatprep.subr.mxu0 0.0
    %356 = vmatpush1.msra.mxu0 0.0
    %357 = vmatprep.subr.mxu0 0.0
    %358 = vmatpush1.msra.mxu0 0.0
    %359 = vmatprep.subr.mxu0 0.0
    %360 = vmatpush1.msra.mxu0 0.0
    %361 = vmatprep.subr.mxu0 0.0
    %362 = vmatpush1.msra.mxu0 0.0
    %363 = vmatprep.subr.mxu0 0.0
    %364 = vmatpush1.msra.mxu0 0.0
    %365 = vmatprep.mubr.f32.mxu0 0.0
    %366 = vmatmul.mubr.f32.gmra.mrb[0].mxu0 %v299
    %v367 = vpop.f32.mrb[0].mxu0
    %v368 = vadd.f32 0.0, %v367
    %v369 = vpop.f32.mrb[0].mxu0
    %370 = vdwg.mxu0
    %v372 = vrot.slane %v368, 7
    %v374 = vadd.f32 %v183, %v372
    %v375 = vxor.u32 %v374, 2147483648
    %v376 = vmul.f32 %v375, 1.442695
    %v377 = vpow.pop %v376
    %v378 = vadd.f32 %v377, 1.0
    %v379 = vrcp.pop %v378
    %v380 = vmul.f32 1.0, %v379
    %v382 = vlaneseq
    %v383 = vshrl.u32 %v382, 7
    %v384 = vsub.s32 0, %v383
    %v385 = vrot.slane %v194, %v384
    %v387 = vmul.f32 %v380, %v385
    %v389 = vlaneseq
    %v390 = vshrl.u32 %v389, 7
    %v391 = vsub.s32 0, %v390
    %v392 = vrot.slane %v195, %v391
    %v394 = vsub.f32 %v387, %v392
    %v396 = vrot.slane %v289, 7
    %v398 = vmul.f32 %v394, %v396
    %400 = vrot.lane.b32.xlu0 %v394, 64
    %v401 = vpop.permute.xlu0 %400
    %v403 = vmul.f32 %v394, %v401
    %405 = vrot.lane.b32.xlu0 %v403, 32
    %v406 = vpop.permute.xlu0 %405
    %v408 = vadd.f32 %v398, %v406
    %v409 = vtanh.pop %v408
    %411 = vrot.lane.b32.xlu0 %v409, 64
    %v412 = vpop.permute.xlu0 %411
    %v414 = vmul.f32 %v394, %v412
    %v416 = vrot.slane %v414, 1
    %417 = vrot.lane.b32.xlu0 %v416, 32
    %v418 = vpop.permute.xlu0 %417
    %v419 = vsel %vm196, %v418, 0
    %421 = vmatprep.subr.mxu0 0.0
    %422 = vmatpush1.msra.mxu0 %v190
    %423 = vmatprep.subr.mxu0 0.0
    %424 = vmatpush1.msra.mxu0 %v191
    %425 = vmatprep.subr.mxu0 0.0
    %426 = vmatpush1.msra.mxu0 %v192
    %427 = vmatprep.subr.mxu0 0.0
    %428 = vmatpush1.msra.mxu0 %v193
    %429 = vmatprep.subr.mxu0 0.0
    %430 = vmatpush1.msra.mxu0 0.0
    %431 = vmatprep.subr.mxu0 0.0
    %432 = vmatpush1.msra.mxu0 0.0
    %433 = vmatprep.subr.mxu0 0.0
    %434 = vmatpush1.msra.mxu0 0.0
    %435 = vmatprep.subr.mxu0 0.0
    %436 = vmatpush1.msra.mxu0 0.0
    %437 = vmatprep.subr.mxu0 0.0
    %438 = vmatpush1.msra.mxu0 0.0
    %439 = vmatprep.subr.mxu0 0.0
    %440 = vmatpush1.msra.mxu0 0.0
    %441 = vmatprep.subr.mxu0 0.0
    %442 = vmatpush1.msra.mxu0 0.0
    %443 = vmatprep.subr.mxu0 0.0
    %444 = vmatpush1.msra.mxu0 0.0
    %445 = vmatprep.subr.mxu0 0.0
    %446 = vmatpush1.msra.mxu0 0.0
    %447 = vmatprep.subr.mxu0 0.0
    %448 = vmatpush1.msra.mxu0 0.0
    %449 = vmatprep.subr.mxu0 0.0
    %450 = vmatpush1.msra.mxu0 0.0
    %451 = vmatprep.subr.mxu0 0.0
    %452 = vmatpush1.msra.mxu0 0.0
    %453 = vmatprep.subr.mxu0 0.0
    %454 = vmatpush1.msra.mxu0 0.0
    %455 = vmatprep.subr.mxu0 0.0
    %456 = vmatpush1.msra.mxu0 0.0
    %457 = vmatprep.subr.mxu0 0.0
    %458 = vmatpush1.msra.mxu0 0.0
    %459 = vmatprep.subr.mxu0 0.0
    %460 = vmatpush1.msra.mxu0 0.0
    %461 = vmatprep.subr.mxu0 0.0
    %462 = vmatpush1.msra.mxu0 0.0
    %463 = vmatprep.subr.mxu0 0.0
    %464 = vmatpush1.msra.mxu0 0.0
    %465 = vmatprep.subr.mxu0 0.0
    %466 = vmatpush1.msra.mxu0 0.0
    %467 = vmatprep.subr.mxu0 0.0
    %468 = vmatpush1.msra.mxu0 0.0
    %469 = vmatprep.subr.mxu0 0.0
    %470 = vmatpush1.msra.mxu0 0.0
    %471 = vmatprep.subr.mxu0 0.0
    %472 = vmatpush1.msra.mxu0 0.0
    %473 = vmatprep.subr.mxu0 0.0
    %474 = vmatpush1.msra.mxu0 0.0
    %475 = vmatprep.subr.mxu0 0.0
    %476 = vmatpush1.msra.mxu0 0.0
    %477 = vmatprep.subr.mxu0 0.0
    %478 = vmatpush1.msra.mxu0 0.0
    %479 = vmatprep.subr.mxu0 0.0
    %480 = vmatpush1.msra.mxu0 0.0
    %481 = vmatprep.subr.mxu0 0.0
    %482 = vmatpush1.msra.mxu0 0.0
    %483 = vmatprep.subr.mxu0 0.0
    %484 = vmatpush1.msra.mxu0 0.0
    %485 = vmatprep.mubr.f32.mxu0 0.0
    %486 = vmatmul.mubr.f32.gmra.mrb[0].mxu0 %v419
    %v487 = vpop.f32.mrb[0].mxu0
    %v488 = vadd.f32 0.0, %v487
    %v489 = vpop.f32.mrb[0].mxu0
    %490 = vdwg.mxu0
    %v492 = vrot.slane %v488, 6
    %v494 = vadd.f32 %v186, %v492
    %v495 = vxor.u32 %v494, 2147483648
    %v496 = vmul.f32 %v495, 1.442695
    %v497 = vpow.pop %v496
    %v498 = vadd.f32 %v497, 1.0
    %v499 = vrcp.pop %v498
    %v500 = vmul.f32 1.0, %v499
    %v501 = vmul.f32 %v500, %v385
    %v502 = vsub.f32 %v501, %v392
    %v504 = vrot.slane %v408, 7
    %v506 = vmul.f32 %v502, %v504
    %508 = vrot.lane.b32.xlu0 %v502, 64
    %v509 = vpop.permute.xlu0 %508
    %v511 = vmul.f32 %v502, %v509
    %513 = vrot.lane.b32.xlu0 %v511, 32
    %v514 = vpop.permute.xlu0 %513
    %v516 = vadd.f32 %v506, %v514
    %v517 = vtanh.pop %v516
    %519 = vrot.lane.b32.xlu0 %v517, 64
    %v520 = vpop.permute.xlu0 %519
    %v522 = vmul.f32 %v502, %v520
    %v524 = vrot.slane %v522, 2
    %525 = vrot.lane.b32.xlu0 %v524, 32
    %v526 = vpop.permute.xlu0 %525
    %v527 = vsel %vm196, %v526, 0
    %529 = vmatprep.subr.mxu0 0.0
    %530 = vmatpush1.msra.mxu0 %v190
    %531 = vmatprep.subr.mxu0 0.0
    %532 = vmatpush1.msra.mxu0 %v191
    %533 = vmatprep.subr.mxu0 0.0
    %534 = vmatpush1.msra.mxu0 %v192
    %535 = vmatprep.subr.mxu0 0.0
    %536 = vmatpush1.msra.mxu0 %v193
    %537 = vmatprep.subr.mxu0 0.0
    %538 = vmatpush1.msra.mxu0 0.0
    %539 = vmatprep.subr.mxu0 0.0
    %540 = vmatpush1.msra.mxu0 0.0
    %541 = vmatprep.subr.mxu0 0.0
    %542 = vmatpush1.msra.mxu0 0.0
    %543 = vmatprep.subr.mxu0 0.0
    %544 = vmatpush1.msra.mxu0 0.0
    %545 = vmatprep.subr.mxu0 0.0
    %546 = vmatpush1.msra.mxu0 0.0
    %547 = vmatprep.subr.mxu0 0.0
    %548 = vmatpush1.msra.mxu0 0.0
    %549 = vmatprep.subr.mxu0 0.0
    %550 = vmatpush1.msra.mxu0 0.0
    %551 = vmatprep.subr.mxu0 0.0
    %552 = vmatpush1.msra.mxu0 0.0
    %553 = vmatprep.subr.mxu0 0.0
    %554 = vmatpush1.msra.mxu0 0.0
    %555 = vmatprep.subr.mxu0 0.0
    %556 = vmatpush1.msra.mxu0 0.0
    %557 = vmatprep.subr.mxu0 0.0
    %558 = vmatpush1.msra.mxu0 0.0
    %559 = vmatprep.subr.mxu0 0.0
    %560 = vmatpush1.msra.mxu0 0.0
    %561 = vmatprep.subr.mxu0 0.0
    %562 = vmatpush1.msra.mxu0 0.0
    %563 = vmatprep.subr.mxu0 0.0
    %564 = vmatpush1.msra.mxu0 0.0
    %565 = vmatprep.subr.mxu0 0.0
    %566 = vmatpush1.msra.mxu0 0.0
    %567 = vmatprep.subr.mxu0 0.0
    %568 = vmatpush1.msra.mxu0 0.0
    %569 = vmatprep.subr.mxu0 0.0
    %570 = vmatpush1.msra.mxu0 0.0
    %571 = vmatprep.subr.mxu0 0.0
    %572 = vmatpush1.msra.mxu0 0.0
    %573 = vmatprep.subr.mxu0 0.0
    %574 = vmatpush1.msra.mxu0 0.0
    %575 = vmatprep.subr.mxu0 0.0
    %576 = vmatpush1.msra.mxu0 0.0
    %577 = vmatprep.subr.mxu0 0.0
    %578 = vmatpush1.msra.mxu0 0.0
    %579 = vmatprep.subr.mxu0 0.0
    %580 = vmatpush1.msra.mxu0 0.0
    %581 = vmatprep.subr.mxu0 0.0
    %582 = vmatpush1.msra.mxu0 0.0
    %583 = vmatprep.subr.mxu0 0.0
    %584 = vmatpush1.msra.mxu0 0.0
    %585 = vmatprep.subr.mxu0 0.0
    %586 = vmatpush1.msra.mxu0 0.0
    %587 = vmatprep.subr.mxu0 0.0
    %588 = vmatpush1.msra.mxu0 0.0
    %589 = vmatprep.subr.mxu0 0.0
    %590 = vmatpush1.msra.mxu0 0.0
    %591 = vmatprep.subr.mxu0 0.0
    %592 = vmatpush1.msra.mxu0 0.0
    %593 = vmatprep.mubr.f32.mxu0 0.0
    %594 = vmatmul.mubr.f32.gmra.mrb[0].mxu0 %v527
    %v595 = vpop.f32.mrb[0].mxu0
    %v596 = vadd.f32 0.0, %v595
    %v597 = vpop.f32.mrb[0].mxu0
    %598 = vdwg.mxu0
    %v600 = vrot.slane %v596, 5
    %v602 = vadd.f32 %v189, %v600
    %v603 = vxor.u32 %v602, 2147483648
    %v604 = vmul.f32 %v603, 1.442695
    %v605 = vpow.pop %v604
    %v606 = vadd.f32 %v605, 1.0
    %v607 = vrcp.pop %v606
    %v608 = vmul.f32 1.0, %v607
    %v609 = vmul.f32 %v608, %v385
    %v610 = vsub.f32 %v609, %v392
    %v612 = vrot.slane %v516, 7
    %v614 = vmul.f32 %v610, %v612
    %616 = vrot.lane.b32.xlu0 %v610, 64
    %v617 = vpop.permute.xlu0 %616
    %v619 = vmul.f32 %v610, %v617
    %621 = vrot.lane.b32.xlu0 %v619, 32
    %v622 = vpop.permute.xlu0 %621
    %v624 = vadd.f32 %v614, %v622
    %v625 = vtanh.pop %v624
    %627 = vrot.lane.b32.xlu0 %v625, 64
    %v628 = vpop.permute.xlu0 %627
    %v630 = vmul.f32 %v610, %v628
    %v632 = vrot.slane %v630, 3
    %633 = vrot.lane.b32.xlu0 %v632, 32
    %v634 = vpop.permute.xlu0 %633
    %v635 = vsel %vm196, %v634, 0
    %637 = vmatprep.subr.mxu0 0.0
    %638 = vmatpush1.msra.mxu0 %v190
    %639 = vmatprep.subr.mxu0 0.0
    %640 = vmatpush1.msra.mxu0 %v191
    %641 = vmatprep.subr.mxu0 0.0
    %642 = vmatpush1.msra.mxu0 %v192
    %643 = vmatprep.subr.mxu0 0.0
    %644 = vmatpush1.msra.mxu0 %v193
    %645 = vmatprep.subr.mxu0 0.0
    %646 = vmatpush1.msra.mxu0 0.0
    %647 = vmatprep.subr.mxu0 0.0
    %648 = vmatpush1.msra.mxu0 0.0
    %649 = vmatprep.subr.mxu0 0.0
    %650 = vmatpush1.msra.mxu0 0.0
    %651 = vmatprep.subr.mxu0 0.0
    %652 = vmatpush1.msra.mxu0 0.0
    %653 = vmatprep.subr.mxu0 0.0
    %654 = vmatpush1.msra.mxu0 0.0
    %655 = vmatprep.subr.mxu0 0.0
    %656 = vmatpush1.msra.mxu0 0.0
    %657 = vmatprep.subr.mxu0 0.0
    %658 = vmatpush1.msra.mxu0 0.0
    %659 = vmatprep.subr.mxu0 0.0
    %660 = vmatpush1.msra.mxu0 0.0
    %661 = vmatprep.subr.mxu0 0.0
    %662 = vmatpush1.msra.mxu0 0.0
    %663 = vmatprep.subr.mxu0 0.0
    %664 = vmatpush1.msra.mxu0 0.0
    %665 = vmatprep.subr.mxu0 0.0
    %666 = vmatpush1.msra.mxu0 0.0
    %667 = vmatprep.subr.mxu0 0.0
    %668 = vmatpush1.msra.mxu0 0.0
    %669 = vmatprep.subr.mxu0 0.0
    %670 = vmatpush1.msra.mxu0 0.0
    %671 = vmatprep.subr.mxu0 0.0
    %672 = vmatpush1.msra.mxu0 0.0
    %673 = vmatprep.subr.mxu0 0.0
    %674 = vmatpush1.msra.mxu0 0.0
    %675 = vmatprep.subr.mxu0 0.0
    %676 = vmatpush1.msra.mxu0 0.0
    %677 = vmatprep.subr.mxu0 0.0
    %678 = vmatpush1.msra.mxu0 0.0
    %679 = vmatprep.subr.mxu0 0.0
    %680 = vmatpush1.msra.mxu0 0.0
    %681 = vmatprep.subr.mxu0 0.0
    %682 = vmatpush1.msra.mxu0 0.0
    %683 = vmatprep.subr.mxu0 0.0
    %684 = vmatpush1.msra.mxu0 0.0
    %685 = vmatprep.subr.mxu0 0.0
    %686 = vmatpush1.msra.mxu0 0.0
    %687 = vmatprep.subr.mxu0 0.0
    %688 = vmatpush1.msra.mxu0 0.0
    %689 = vmatprep.subr.mxu0 0.0
    %690 = vmatpush1.msra.mxu0 0.0
    %691 = vmatprep.subr.mxu0 0.0
    %692 = vmatpush1.msra.mxu0 0.0
    %693 = vmatprep.subr.mxu0 0.0
    %694 = vmatpush1.msra.mxu0 0.0
    %695 = vmatprep.subr.mxu0 0.0
    %696 = vmatpush1.msra.mxu0 0.0
    %697 = vmatprep.subr.mxu0 0.0
    %698 = vmatpush1.msra.mxu0 0.0
    %699 = vmatprep.subr.mxu0 0.0
    %700 = vmatpush1.msra.mxu0 0.0
    %701 = vmatprep.mubr.f32.mxu0 0.0
    %702 = vmatmul.mubr.f32.gmra.mrb[0].mxu0 %v635
    %v703 = vpop.f32.mrb[0].mxu0
    %v704 = vadd.f32 0.0, %v703
    %v705 = vpop.f32.mrb[0].mxu0
    %706 = vdwg.mxu0
    %v708 = vrot.slane %v704, 4
    %v710 = vadd.f32 %v180, %v708
    %v711 = vxor.u32 %v710, 2147483648
    %v712 = vmul.f32 %v711, 1.442695
    %v713 = vpow.pop %v712
    %v714 = vadd.f32 %v713, 1.0
    %v715 = vrcp.pop %v714
    %v716 = vmul.f32 1.0, %v715
    %v717 = vmul.f32 %v716, %v385
    %v718 = vsub.f32 %v717, %v392
    %v720 = vrot.slane %v624, 7
    %v722 = vmul.f32 %v718, %v720
    %724 = vrot.lane.b32.xlu0 %v718, 64
    %v725 = vpop.permute.xlu0 %724
    %v727 = vmul.f32 %v718, %v725
    %729 = vrot.lane.b32.xlu0 %v727, 32
    %v730 = vpop.permute.xlu0 %729
    %v732 = vadd.f32 %v722, %v730
    %v733 = vtanh.pop %v732
    %735 = vrot.lane.b32.xlu0 %v733, 64
    %v736 = vpop.permute.xlu0 %735
    %v738 = vmul.f32 %v718, %v736
    %v740 = vrot.slane %v738, 4
    %741 = vrot.lane.b32.xlu0 %v740, 32
    %v742 = vpop.permute.xlu0 %741
    %v743 = vsel %vm196, %v742, 0
    %745 = vmatprep.subr.mxu0 0.0
    %746 = vmatpush1.msra.mxu0 %v190
    %747 = vmatprep.subr.mxu0 0.0
    %748 = vmatpush1.msra.mxu0 %v191
    %749 = vmatprep.subr.mxu0 0.0
    %750 = vmatpush1.msra.mxu0 %v192
    %751 = vmatprep.subr.mxu0 0.0
    %752 = vmatpush1.msra.mxu0 %v193
    %753 = vmatprep.subr.mxu0 0.0
    %754 = vmatpush1.msra.mxu0 0.0
    %755 = vmatprep.subr.mxu0 0.0
    %756 = vmatpush1.msra.mxu0 0.0
    %757 = vmatprep.subr.mxu0 0.0
    %758 = vmatpush1.msra.mxu0 0.0
    %759 = vmatprep.subr.mxu0 0.0
    %760 = vmatpush1.msra.mxu0 0.0
    %761 = vmatprep.subr.mxu0 0.0
    %762 = vmatpush1.msra.mxu0 0.0
    %763 = vmatprep.subr.mxu0 0.0
    %764 = vmatpush1.msra.mxu0 0.0
    %765 = vmatprep.subr.mxu0 0.0
    %766 = vmatpush1.msra.mxu0 0.0
    %767 = vmatprep.subr.mxu0 0.0
    %768 = vmatpush1.msra.mxu0 0.0
    %769 = vmatprep.subr.mxu0 0.0
    %770 = vmatpush1.msra.mxu0 0.0
    %771 = vmatprep.subr.mxu0 0.0
    %772 = vmatpush1.msra.mxu0 0.0
    %773 = vmatprep.subr.mxu0 0.0
    %774 = vmatpush1.msra.mxu0 0.0
    %775 = vmatprep.subr.mxu0 0.0
    %776 = vmatpush1.msra.mxu0 0.0
    %777 = vmatprep.subr.mxu0 0.0
    %778 = vmatpush1.msra.mxu0 0.0
    %779 = vmatprep.subr.mxu0 0.0
    %780 = vmatpush1.msra.mxu0 0.0
    %781 = vmatprep.subr.mxu0 0.0
    %782 = vmatpush1.msra.mxu0 0.0
    %783 = vmatprep.subr.mxu0 0.0
    %784 = vmatpush1.msra.mxu0 0.0
    %785 = vmatprep.subr.mxu0 0.0
    %786 = vmatpush1.msra.mxu0 0.0
    %787 = vmatprep.subr.mxu0 0.0
    %788 = vmatpush1.msra.mxu0 0.0
    %789 = vmatprep.subr.mxu0 0.0
    %790 = vmatpush1.msra.mxu0 0.0
    %791 = vmatprep.subr.mxu0 0.0
    %792 = vmatpush1.msra.mxu0 0.0
    %793 = vmatprep.subr.mxu0 0.0
    %794 = vmatpush1.msra.mxu0 0.0
    %795 = vmatprep.subr.mxu0 0.0
    %796 = vmatpush1.msra.mxu0 0.0
    %797 = vmatprep.subr.mxu0 0.0
    %798 = vmatpush1.msra.mxu0 0.0
    %799 = vmatprep.subr.mxu0 0.0
    %800 = vmatpush1.msra.mxu0 0.0
    %801 = vmatprep.subr.mxu0 0.0
    %802 = vmatpush1.msra.mxu0 0.0
    %803 = vmatprep.subr.mxu0 0.0
    %804 = vmatpush1.msra.mxu0 0.0
    %805 = vmatprep.subr.mxu0 0.0
    %806 = vmatpush1.msra.mxu0 0.0
    %807 = vmatprep.subr.mxu0 0.0
    %808 = vmatpush1.msra.mxu0 0.0
    %809 = vmatprep.mubr.f32.mxu0 0.0
    %810 = vmatmul.mubr.f32.gmra.mrb[0].mxu0 %v743
    %v811 = vpop.f32.mrb[0].mxu0
    %v812 = vadd.f32 0.0, %v811
    %v813 = vpop.f32.mrb[0].mxu0
    %814 = vdwg.mxu0
    %v816 = vrot.slane %v812, 3
    %v818 = vadd.f32 %v183, %v816
    %v819 = vxor.u32 %v818, 2147483648
    %v820 = vmul.f32 %v819, 1.442695
    %v821 = vpow.pop %v820
    %v822 = vadd.f32 %v821, 1.0
    %v823 = vrcp.pop %v822
    %v824 = vmul.f32 1.0, %v823
    %v825 = vmul.f32 %v824, %v385
    %v826 = vsub.f32 %v825, %v392
    %v828 = vrot.slane %v732, 7
    %v830 = vmul.f32 %v826, %v828
    %832 = vrot.lane.b32.xlu0 %v826, 64
    %v833 = vpop.permute.xlu0 %832
    %v835 = vmul.f32 %v826, %v833
    %837 = vrot.lane.b32.xlu0 %v835, 32
    %v838 = vpop.permute.xlu0 %837
    %v840 = vadd.f32 %v830, %v838
    %v841 = vtanh.pop %v840
    %843 = vrot.lane.b32.xlu0 %v841, 64
    %v844 = vpop.permute.xlu0 %843
    %v846 = vmul.f32 %v826, %v844
    %v848 = vrot.slane %v846, 5
    %849 = vrot.lane.b32.xlu0 %v848, 32
    %v850 = vpop.permute.xlu0 %849
    %v851 = vsel %vm196, %v850, 0
    %853 = vmatprep.subr.mxu0 0.0
    %854 = vmatpush1.msra.mxu0 %v190
    %855 = vmatprep.subr.mxu0 0.0
    %856 = vmatpush1.msra.mxu0 %v191
    %857 = vmatprep.subr.mxu0 0.0
    %858 = vmatpush1.msra.mxu0 %v192
    %859 = vmatprep.subr.mxu0 0.0
    %860 = vmatpush1.msra.mxu0 %v193
    %861 = vmatprep.subr.mxu0 0.0
    %862 = vmatpush1.msra.mxu0 0.0
    %863 = vmatprep.subr.mxu0 0.0
    %864 = vmatpush1.msra.mxu0 0.0
    %865 = vmatprep.subr.mxu0 0.0
    %866 = vmatpush1.msra.mxu0 0.0
    %867 = vmatprep.subr.mxu0 0.0
    %868 = vmatpush1.msra.mxu0 0.0
    %869 = vmatprep.subr.mxu0 0.0
    %870 = vmatpush1.msra.mxu0 0.0
    %871 = vmatprep.subr.mxu0 0.0
    %872 = vmatpush1.msra.mxu0 0.0
    %873 = vmatprep.subr.mxu0 0.0
    %874 = vmatpush1.msra.mxu0 0.0
    %875 = vmatprep.subr.mxu0 0.0
    %876 = vmatpush1.msra.mxu0 0.0
    %877 = vmatprep.subr.mxu0 0.0
    %878 = vmatpush1.msra.mxu0 0.0
    %879 = vmatprep.subr.mxu0 0.0
    %880 = vmatpush1.msra.mxu0 0.0
    %881 = vmatprep.subr.mxu0 0.0
    %882 = vmatpush1.msra.mxu0 0.0
    %883 = vmatprep.subr.mxu0 0.0
    %884 = vmatpush1.msra.mxu0 0.0
    %885 = vmatprep.subr.mxu0 0.0
    %886 = vmatpush1.msra.mxu0 0.0
    %887 = vmatprep.subr.mxu0 0.0
    %888 = vmatpush1.msra.mxu0 0.0
    %889 = vmatprep.subr.mxu0 0.0
    %890 = vmatpush1.msra.mxu0 0.0
    %891 = vmatprep.subr.mxu0 0.0
    %892 = vmatpush1.msra.mxu0 0.0
    %893 = vmatprep.subr.mxu0 0.0
    %894 = vmatpush1.msra.mxu0 0.0
    %895 = vmatprep.subr.mxu0 0.0
    %896 = vmatpush1.msra.mxu0 0.0
    %897 = vmatprep.subr.mxu0 0.0
    %898 = vmatpush1.msra.mxu0 0.0
    %899 = vmatprep.subr.mxu0 0.0
    %900 = vmatpush1.msra.mxu0 0.0
    %901 = vmatprep.subr.mxu0 0.0
    %902 = vmatpush1.msra.mxu0 0.0
    %903 = vmatprep.subr.mxu0 0.0
    %904 = vmatpush1.msra.mxu0 0.0
    %905 = vmatprep.subr.mxu0 0.0
    %906 = vmatpush1.msra.mxu0 0.0
    %907 = vmatprep.subr.mxu0 0.0
    %908 = vmatpush1.msra.mxu0 0.0
    %909 = vmatprep.subr.mxu0 0.0
    %910 = vmatpush1.msra.mxu0 0.0
    %911 = vmatprep.subr.mxu0 0.0
    %912 = vmatpush1.msra.mxu0 0.0
    %913 = vmatprep.subr.mxu0 0.0
    %914 = vmatpush1.msra.mxu0 0.0
    %915 = vmatprep.subr.mxu0 0.0
    %916 = vmatpush1.msra.mxu0 0.0
    %917 = vmatprep.mubr.f32.mxu0 0.0
    %918 = vmatmul.mubr.f32.gmra.mrb[0].mxu0 %v851
    %v919 = vpop.f32.mrb[0].mxu0
    %v920 = vadd.f32 0.0, %v919
    %v921 = vpop.f32.mrb[0].mxu0
    %922 = vdwg.mxu0
    %v924 = vrot.slane %v920, 2
    %v926 = vadd.f32 %v186, %v924
    %v927 = vxor.u32 %v926, 2147483648
    %v928 = vmul.f32 %v927, 1.442695
    %v929 = vpow.pop %v928
    %v930 = vadd.f32 %v929, 1.0
    %v931 = vrcp.pop %v930
    %v932 = vmul.f32 1.0, %v931
    %v933 = vmul.f32 %v932, %v385
    %v934 = vsub.f32 %v933, %v392
    %v936 = vrot.slane %v840, 7
    %v938 = vmul.f32 %v934, %v936
    %940 = vrot.lane.b32.xlu0 %v934, 64
    %v941 = vpop.permute.xlu0 %940
    %v943 = vmul.f32 %v934, %v941
    %945 = vrot.lane.b32.xlu0 %v943, 32
    %v946 = vpop.permute.xlu0 %945
    %v948 = vadd.f32 %v938, %v946
    %v949 = vtanh.pop %v948
    %951 = vrot.lane.b32.xlu0 %v949, 64
    %v952 = vpop.permute.xlu0 %951
    %v954 = vmul.f32 %v934, %v952
    %v956 = vrot.slane %v954, 6
    %957 = vrot.lane.b32.xlu0 %v956, 32
    %v958 = vpop.permute.xlu0 %957
    %v959 = vsel %vm196, %v958, 0
    %961 = vmatprep.subr.mxu0 0.0
    %962 = vmatpush1.msra.mxu0 %v190
    %963 = vmatprep.subr.mxu0 0.0
    %964 = vmatpush1.msra.mxu0 %v191
    %965 = vmatprep.subr.mxu0 0.0
    %966 = vmatpush1.msra.mxu0 %v192
    %967 = vmatprep.subr.mxu0 0.0
    %968 = vmatpush1.msra.mxu0 %v193
    %969 = vmatprep.subr.mxu0 0.0
    %970 = vmatpush1.msra.mxu0 0.0
    %971 = vmatprep.subr.mxu0 0.0
    %972 = vmatpush1.msra.mxu0 0.0
    %973 = vmatprep.subr.mxu0 0.0
    %974 = vmatpush1.msra.mxu0 0.0
    %975 = vmatprep.subr.mxu0 0.0
    %976 = vmatpush1.msra.mxu0 0.0
    %977 = vmatprep.subr.mxu0 0.0
    %978 = vmatpush1.msra.mxu0 0.0
    %979 = vmatprep.subr.mxu0 0.0
    %980 = vmatpush1.msra.mxu0 0.0
    %981 = vmatprep.subr.mxu0 0.0
    %982 = vmatpush1.msra.mxu0 0.0
    %983 = vmatprep.subr.mxu0 0.0
    %984 = vmatpush1.msra.mxu0 0.0
    %985 = vmatprep.subr.mxu0 0.0
    %986 = vmatpush1.msra.mxu0 0.0
    %987 = vmatprep.subr.mxu0 0.0
    %988 = vmatpush1.msra.mxu0 0.0
    %989 = vmatprep.subr.mxu0 0.0
    %990 = vmatpush1.msra.mxu0 0.0
    %991 = vmatprep.subr.mxu0 0.0
    %992 = vmatpush1.msra.mxu0 0.0
    %993 = vmatprep.subr.mxu0 0.0
    %994 = vmatpush1.msra.mxu0 0.0
    %995 = vmatprep.subr.mxu0 0.0
    %996 = vmatpush1.msra.mxu0 0.0
    %997 = vmatprep.subr.mxu0 0.0
    %998 = vmatpush1.msra.mxu0 0.0
    %999 = vmatprep.subr.mxu0 0.0
    %1000 = vmatpush1.msra.mxu0 0.0
    %1001 = vmatprep.subr.mxu0 0.0
    %1002 = vmatpush1.msra.mxu0 0.0
    %1003 = vmatprep.subr.mxu0 0.0
    %1004 = vmatpush1.msra.mxu0 0.0
    %1005 = vmatprep.subr.mxu0 0.0
    %1006 = vmatpush1.msra.mxu0 0.0
    %1007 = vmatprep.subr.mxu0 0.0
    %1008 = vmatpush1.msra.mxu0 0.0
    %1009 = vmatprep.subr.mxu0 0.0
    %1010 = vmatpush1.msra.mxu0 0.0
    %1011 = vmatprep.subr.mxu0 0.0
    %1012 = vmatpush1.msra.mxu0 0.0
    %1013 = vmatprep.subr.mxu0 0.0
    %1014 = vmatpush1.msra.mxu0 0.0
    %1015 = vmatprep.subr.mxu0 0.0
    %1016 = vmatpush1.msra.mxu0 0.0
    %1017 = vmatprep.subr.mxu0 0.0
    %1018 = vmatpush1.msra.mxu0 0.0
    %1019 = vmatprep.subr.mxu0 0.0
    %1020 = vmatpush1.msra.mxu0 0.0
    %1021 = vmatprep.subr.mxu0 0.0
    %1022 = vmatpush1.msra.mxu0 0.0
    %1023 = vmatprep.subr.mxu0 0.0
    %1024 = vmatpush1.msra.mxu0 0.0
    %1025 = vmatprep.mubr.f32.mxu0 0.0
    %1026 = vmatmul.mubr.f32.gmra.mrb[0].mxu0 %v959
    %v1027 = vpop.f32.mrb[0].mxu0
    %v1028 = vadd.f32 0.0, %v1027
    %v1029 = vpop.f32.mrb[0].mxu0
    %1030 = vdwg.mxu0
    %v1032 = vrot.slane %v1028, 1
    %v1034 = vadd.f32 %v189, %v1032
    %v1035 = vxor.u32 %v1034, 2147483648
    %v1036 = vmul.f32 %v1035, 1.442695
    %v1037 = vpow.pop %v1036
    %v1038 = vadd.f32 %v1037, 1.0
    %v1039 = vrcp.pop %v1038
    %v1040 = vmul.f32 1.0, %v1039
    %v1041 = vmul.f32 %v1040, %v385
    %v1042 = vsub.f32 %v1041, %v392
    %v1044 = vrot.slane %v948, 7
    %v1046 = vmul.f32 %v1042, %v1044
    %1048 = vrot.lane.b32.xlu0 %v1042, 64
    %v1049 = vpop.permute.xlu0 %1048
    %v1051 = vmul.f32 %v1042, %v1049
    %1053 = vrot.lane.b32.xlu0 %v1051, 32
    %v1054 = vpop.permute.xlu0 %1053
    %v1056 = vadd.f32 %v1046, %v1054
    %v1057 = vtanh.pop %v1056
    %1059 = vrot.lane.b32.xlu0 %v1057, 64
    %v1060 = vpop.permute.xlu0 %1059
    %v1062 = vmul.f32 %v1042, %v1060
    %v1063 = vlaneseq
    %v1064 = vshrl.u32 %v1063, 7
    %v1067 = vrot.slane %v1062, 7
    %1068 = vrot.lane.b32.xlu0 %v1067, 32
    %v1069 = vpop.permute.xlu0 %1068
    %v1071 = vsel %vm163, %v298, %v1069
    %vm1072 = vcmp.eq.s32.totalorder %v1064, 0
    %v1073 = vlaneseq
    %v1074 = vshrl.u32 %v1073, 7
    %v1075 = vsub.s32 0, %v1074
    %v1076 = vrot.slane %v1071, %v1075
    %v1077 = vsel %vm1072, %v1076, 0.0
    %v1080 = vsel %vm163, %v418, %v958
    %vm1081 = vcmp.eq.s32.totalorder %v1064, 1
    %v1082 = vlaneseq
    %v1083 = vshrl.u32 %v1082, 7
    %v1084 = vsub.s32 0, %v1083
    %v1085 = vrot.slane %v1080, %v1084
    %v1086 = vsel %vm1081, %v1085, %v1077
    %v1089 = vsel %vm163, %v526, %v850
    %vm1090 = vcmp.eq.s32.totalorder %v1064, 2
    %v1091 = vlaneseq
    %v1092 = vshrl.u32 %v1091, 7
    %v1093 = vsub.s32 0, %v1092
    %v1094 = vrot.slane %v1089, %v1093
    %v1095 = vsel %vm1090, %v1094, %v1086
    %v1098 = vsel %vm163, %v634, %v742
    %vm1099 = vcmp.eq.s32.totalorder %v1064, 3
    %v1100 = vlaneseq
    %v1101 = vshrl.u32 %v1100, 7
    %v1102 = vsub.s32 0, %v1101
    %v1103 = vrot.slane %v1098, %v1102
    %v1104 = vsel %vm1099, %v1103, %v1095
    %v1105 = vsel %vm163, %v742, %v634
    %vm1106 = vcmp.eq.s32.totalorder %v1064, 4
    %v1107 = vlaneseq
    %v1108 = vshrl.u32 %v1107, 7
    %v1109 = vsub.s32 0, %v1108
    %v1110 = vrot.slane %v1105, %v1109
    %v1111 = vsel %vm1106, %v1110, %v1104
    %v1112 = vsel %vm163, %v850, %v526
    %vm1113 = vcmp.eq.s32.totalorder %v1064, 5
    %v1114 = vlaneseq
    %v1115 = vshrl.u32 %v1114, 7
    %v1116 = vsub.s32 0, %v1115
    %v1117 = vrot.slane %v1112, %v1116
    %v1118 = vsel %vm1113, %v1117, %v1111
    %v1119 = vsel %vm163, %v958, %v418
    %vm1120 = vcmp.eq.s32.totalorder %v1064, 6
    %v1121 = vlaneseq
    %v1122 = vshrl.u32 %v1121, 7
    %v1123 = vsub.s32 0, %v1122
    %v1124 = vrot.slane %v1119, %v1123
    %v1125 = vsel %vm1120, %v1124, %v1118
    %v1126 = vsel %vm163, %v1069, %v298
    %vm1127 = vcmp.eq.s32.totalorder %v1064, 7
    %v1128 = vlaneseq
    %v1129 = vshrl.u32 %v1128, 7
    %v1130 = vsub.s32 0, %v1129
    %v1131 = vrot.slane %v1126, %v1130
    %v1132 = vsel %vm1127, %v1131, %v1125
    %v1133 = vld [vmem:[%s6] sm:$0xff]
    %v1134 = vld [vmem:[%s6 + $0x8] sm:$0xff]
    %v1135 = vld [vmem:[%s6 + $0x10] sm:$0xff]
    %v1136 = vld [vmem:[%s6 + $0x18] sm:$0xff]
    %v1137 = vld [vmem:[#allocation7] sm:$0x1]
    %v1139 = vlaneseq
    %v1140 = vshrl.u32 %v1139, 7
    %v1141 = vsub.s32 0, %v1140
    %v1142 = vrot.slane %v1137, %v1141
    %v1145 = vsel %vm196, %v1132, 0
    %1147 = vmatprep.subr.mxu0 0.0
    %1148 = vmatpush1.msra.mxu0 %v1133
    %1149 = vmatprep.subr.mxu0 0.0
    %1150 = vmatpush1.msra.mxu0 %v1134
    %1151 = vmatprep.subr.mxu0 0.0
    %1152 = vmatpush1.msra.mxu0 %v1135
    %1153 = vmatprep.subr.mxu0 0.0
    %1154 = vmatpush1.msra.mxu0 %v1136
    %1155 = vmatprep.subr.mxu0 0.0
    %1156 = vmatpush1.msra.mxu0 0.0
    %1157 = vmatprep.subr.mxu0 0.0
    %1158 = vmatpush1.msra.mxu0 0.0
    %1159 = vmatprep.subr.mxu0 0.0
    %1160 = vmatpush1.msra.mxu0 0.0
    %1161 = vmatprep.subr.mxu0 0.0
    %1162 = vmatpush1.msra.mxu0 0.0
    %1163 = vmatprep.subr.mxu0 0.0
    %1164 = vmatpush1.msra.mxu0 0.0
    %1165 = vmatprep.subr.mxu0 0.0
    %1166 = vmatpush1.msra.mxu0 0.0
    %1167 = vmatprep.subr.mxu0 0.0
    %1168 = vmatpush1.msra.mxu0 0.0
    %1169 = vmatprep.subr.mxu0 0.0
    %1170 = vmatpush1.msra.mxu0 0.0
    %1171 = vmatprep.subr.mxu0 0.0
    %1172 = vmatpush1.msra.mxu0 0.0
    %1173 = vmatprep.subr.mxu0 0.0
    %1174 = vmatpush1.msra.mxu0 0.0
    %1175 = vmatprep.subr.mxu0 0.0
    %1176 = vmatpush1.msra.mxu0 0.0
    %1177 = vmatprep.subr.mxu0 0.0
    %1178 = vmatpush1.msra.mxu0 0.0
    %1179 = vmatprep.subr.mxu0 0.0
    %1180 = vmatpush1.msra.mxu0 0.0
    %1181 = vmatprep.subr.mxu0 0.0
    %1182 = vmatpush1.msra.mxu0 0.0
    %1183 = vmatprep.subr.mxu0 0.0
    %1184 = vmatpush1.msra.mxu0 0.0
    %1185 = vmatprep.subr.mxu0 0.0
    %1186 = vmatpush1.msra.mxu0 0.0
    %1187 = vmatprep.subr.mxu0 0.0
    %1188 = vmatpush1.msra.mxu0 0.0
    %1189 = vmatprep.subr.mxu0 0.0
    %1190 = vmatpush1.msra.mxu0 0.0
    %1191 = vmatprep.subr.mxu0 0.0
    %1192 = vmatpush1.msra.mxu0 0.0
    %1193 = vmatprep.subr.mxu0 0.0
    %1194 = vmatpush1.msra.mxu0 0.0
    %1195 = vmatprep.subr.mxu0 0.0
    %1196 = vmatpush1.msra.mxu0 0.0
    %1197 = vmatprep.subr.mxu0 0.0
    %1198 = vmatpush1.msra.mxu0 0.0
    %1199 = vmatprep.subr.mxu0 0.0
    %1200 = vmatpush1.msra.mxu0 0.0
    %1201 = vmatprep.subr.mxu0 0.0
    %1202 = vmatpush1.msra.mxu0 0.0
    %1203 = vmatprep.subr.mxu0 0.0
    %1204 = vmatpush1.msra.mxu0 0.0
    %1205 = vmatprep.subr.mxu0 0.0
    %1206 = vmatpush1.msra.mxu0 0.0
    %1207 = vmatprep.subr.mxu0 0.0
    %1208 = vmatpush1.msra.mxu0 0.0
    %1209 = vmatprep.subr.mxu0 0.0
    %1210 = vmatpush1.msra.mxu0 0.0
    %1211 = vmatprep.mubr.f32.mxu0 0.0
    %1212 = vmatmul.mubr.f32.gmra.mrb[0].mxu0 %v1145
    %v1213 = vpop.f32.mrb[0].mxu0
    %v1214 = vadd.f32 %v1142, %v1213
    %v1215 = vpop.f32.mrb[0].mxu0
    %1216 = vdwg.mxu0
    %v1217 = vld [vmem:[%s8] sm:$0x1f]
    %v1218 = vld [vmem:[%s9] sm:$0x1f]
    %vm1219 = vcmp.eq.s32.totalorder %v1064, %v161
    %v1220 = vlaneseq
    %v1221 = vshrl.u32 %v1220, 7
    %v1222 = vsub.s32 0, %v1221
    %v1223 = vrot.slane %v1214, %v1222
    %v1224 = vsel %vm1219, %v1223, -3e+38
    %vm1225 = vcmask 36864
    %v1226 = vsel %vm1225, %v1224, -inf
    %1227 = vmax.xlane.f32.xlu0 %v1226
    %v1228 = vpop.xlane.xlu0 %1227
    %v1229 = vlaneseq
    %v1230 = vshrl.u32 %v1229, 7
    %v1231 = vsub.s32 2, %v1230
    %v1232 = vrot.slane %v1214, %v1231
    %v1233 = vsel %vm1219, %v1232, -3e+38
    %v1234 = vsel %vm1225, %v1233, -inf
    %1235 = vmax.xlane.f32.xlu0 %v1234
    %v1236 = vpop.xlane.xlu0 %1235
    %v1237 = vlaneseq
    %v1238 = vshrl.u32 %v1237, 7
    %v1239 = vsub.s32 4, %v1238
    %v1240 = vrot.slane %v1214, %v1239
    %v1241 = vsel %vm1219, %v1240, -3e+38
    %v1242 = vsel %vm1225, %v1241, -inf
    %1243 = vmax.xlane.f32.xlu0 %v1242
    %v1244 = vpop.xlane.xlu0 %1243
    %v1245 = vlaneseq
    %v1246 = vshrl.u32 %v1245, 7
    %v1247 = vsub.s32 6, %v1246
    %v1248 = vrot.slane %v1214, %v1247
    %v1249 = vsel %vm1219, %v1248, -3e+38
    %v1250 = vsel %vm1225, %v1249, -inf
    %1251 = vmax.xlane.f32.xlu0 %v1250
    %v1252 = vpop.xlane.xlu0 %1251
    %vm1253 = vcmp.eq.s32.totalorder %v161, 3
    %v1254 = vsel %vm1253, 0.0, -1e+08
    %v1255 = vadd.f32 %v1254, %v1217
    %v1256 = vsel %vm1225, %v1255, -inf
    %1257 = vmax.xlane.f32.xlu0 %v1256
    %v1258 = vpop.xlane.xlu0 %1257
    %vm1259 = vcmp.eq.f32.partialorder %v1255, %v1258
    %v1260 = vsel %vm1259, %v161, 5
    %v1261 = vsel %vm1225, %v1260, 2147483647
    %v1262 = vand.u32 %v1261, 65535
    %v1263 = vshra.s32 %v1261, 16
    %v1264 = vcvt.s32.f32 %v1262
    %v1265 = vcvt.s32.f32 %v1263
    %1266 = vmin.xlane.f32.xlu0 %v1265
    %v1267 = vpop.xlane.xlu0 %1266
    %vm1268 = vcmp.eq.f32.partialorder %v1265, %v1267
    %v1269 = vsel %vm1268, %v1264, inf
    %1270 = vmin.xlane.f32.xlu0 %v1269
    %v1271 = vpop.xlane.xlu0 %1270
    %v1272 = vcvt.f32.s32 %v1271
    %v1273 = vcvt.f32.s32 %v1267
    %v1274 = vshll.u32 %v1273, 16
    %v1275 = vadd.s32 %v1274, %v1272
    %v1276 = vadd.f32 %v1258, %v1228
    %v1277 = vadd.f32 %v1276, %v1218
    %v1278 = vsel %vm1225, %v1277, -inf
    %v1279 = vrot.slane %v1278, 4
    %v1280 = vmax.f32 %v1278, %v1279
    %v1281 = vrot.slane %v1280, 2
    %v1282 = vmax.f32 %v1280, %v1281
    %v1283 = vrot.slane %v1282, 1
    %v1284 = vmax.f32 %v1282, %v1283
    %vm1285 = vcmp.eq.f32.partialorder %v1277, %v1284
    %v1286 = vsel %vm1285, %v1064, 5
    %v1287 = vsel %vm1225, %v1286, 2147483647
    %v1288 = vrot.slane %v1287, 4
    %vm1289 = vcmp.lt.s32.totalorder %v1287, %v1288
    %v1290 = vsel %vm1289, %v1287, %v1288
    %v1291 = vrot.slane %v1290, 2
    %vm1292 = vcmp.lt.s32.totalorder %v1290, %v1291
    %v1293 = vsel %vm1292, %v1290, %v1291
    %v1294 = vrot.slane %v1293, 1
    %vm1295 = vcmp.lt.s32.totalorder %v1293, %v1294
    %v1296 = vsel %vm1295, %v1293, %v1294
    %v1297 = vadd.f32 %v1284, %v1214
    %v1298 = vlaneseq
    %v1299 = vshrl.u32 %v1298, 7
    %v1300 = vsub.s32 1, %v1299
    %v1301 = vrot.slane %v1297, %v1300
    %v1302 = vadd.f32 %v1301, %v1217
    %v1303 = vsel %vm1225, %v1302, -inf
    %1304 = vmax.xlane.f32.xlu0 %v1303
    %v1305 = vpop.xlane.xlu0 %1304
    %vm1306 = vcmp.eq.f32.partialorder %v1302, %v1305
    %v1307 = vsel %vm1306, %v161, 5
    %v1308 = vsel %vm1225, %v1307, 2147483647
    %v1309 = vand.u32 %v1308, 65535
    %v1310 = vshra.s32 %v1308, 16
    %v1311 = vcvt.s32.f32 %v1309
    %v1312 = vcvt.s32.f32 %v1310
    %1313 = vmin.xlane.f32.xlu0 %v1312
    %v1314 = vpop.xlane.xlu0 %1313
    %vm1315 = vcmp.eq.f32.partialorder %v1312, %v1314
    %v1316 = vsel %vm1315, %v1311, inf
    %1317 = vmin.xlane.f32.xlu0 %v1316
    %v1318 = vpop.xlane.xlu0 %1317
    %v1319 = vcvt.f32.s32 %v1318
    %v1320 = vcvt.f32.s32 %v1314
    %v1321 = vshll.u32 %v1320, 16
    %v1322 = vadd.s32 %v1321, %v1319
    %v1323 = vadd.f32 %v1305, %v1236
    %v1324 = vadd.f32 %v1323, %v1218
    %v1325 = vsel %vm1225, %v1324, -inf
    %v1326 = vrot.slane %v1325, 4
    %v1327 = vmax.f32 %v1325, %v1326
    %v1328 = vrot.slane %v1327, 2
    %v1329 = vmax.f32 %v1327, %v1328
    %v1330 = vrot.slane %v1329, 1
    %v1331 = vmax.f32 %v1329, %v1330
    %vm1332 = vcmp.eq.f32.partialorder %v1324, %v1331
    %v1333 = vsel %vm1332, %v1064, 5
    %v1334 = vsel %vm1225, %v1333, 2147483647
    %v1335 = vrot.slane %v1334, 4
    %vm1336 = vcmp.lt.s32.totalorder %v1334, %v1335
    %v1337 = vsel %vm1336, %v1334, %v1335
    %v1338 = vrot.slane %v1337, 2
    %vm1339 = vcmp.lt.s32.totalorder %v1337, %v1338
    %v1340 = vsel %vm1339, %v1337, %v1338
    %v1341 = vrot.slane %v1340, 1
    %vm1342 = vcmp.lt.s32.totalorder %v1340, %v1341
    %v1343 = vsel %vm1342, %v1340, %v1341
    %v1344 = vadd.f32 %v1331, %v1214
    %v1345 = vlaneseq
    %v1346 = vshrl.u32 %v1345, 7
    %v1347 = vsub.s32 3, %v1346
    %v1348 = vrot.slane %v1344, %v1347
    %v1349 = vadd.f32 %v1348, %v1217
    %v1350 = vsel %vm1225, %v1349, -inf
    %1351 = vmax.xlane.f32.xlu0 %v1350
    %v1352 = vpop.xlane.xlu0 %1351
    %vm1353 = vcmp.eq.f32.partialorder %v1349, %v1352
    %v1354 = vsel %vm1353, %v161, 5
    %v1355 = vsel %vm1225, %v1354, 2147483647
    %v1356 = vand.u32 %v1355, 65535
    %v1357 = vshra.s32 %v1355, 16
    %v1358 = vcvt.s32.f32 %v1356
    %v1359 = vcvt.s32.f32 %v1357
    %1360 = vmin.xlane.f32.xlu0 %v1359
    %v1361 = vpop.xlane.xlu0 %1360
    %vm1362 = vcmp.eq.f32.partialorder %v1359, %v1361
    %v1363 = vsel %vm1362, %v1358, inf
    %1364 = vmin.xlane.f32.xlu0 %v1363
    %v1365 = vpop.xlane.xlu0 %1364
    %v1366 = vcvt.f32.s32 %v1365
    %v1367 = vcvt.f32.s32 %v1361
    %v1368 = vshll.u32 %v1367, 16
    %v1369 = vadd.s32 %v1368, %v1366
    %v1370 = vadd.f32 %v1352, %v1244
    %v1371 = vadd.f32 %v1370, %v1218
    %v1372 = vsel %vm1225, %v1371, -inf
    %v1373 = vrot.slane %v1372, 4
    %v1374 = vmax.f32 %v1372, %v1373
    %v1375 = vrot.slane %v1374, 2
    %v1376 = vmax.f32 %v1374, %v1375
    %v1377 = vrot.slane %v1376, 1
    %v1378 = vmax.f32 %v1376, %v1377
    %vm1379 = vcmp.eq.f32.partialorder %v1371, %v1378
    %v1380 = vsel %vm1379, %v1064, 5
    %v1381 = vsel %vm1225, %v1380, 2147483647
    %v1382 = vrot.slane %v1381, 4
    %vm1383 = vcmp.lt.s32.totalorder %v1381, %v1382
    %v1384 = vsel %vm1383, %v1381, %v1382
    %v1385 = vrot.slane %v1384, 2
    %vm1386 = vcmp.lt.s32.totalorder %v1384, %v1385
    %v1387 = vsel %vm1386, %v1384, %v1385
    %v1388 = vrot.slane %v1387, 1
    %vm1389 = vcmp.lt.s32.totalorder %v1387, %v1388
    %v1390 = vsel %vm1389, %v1387, %v1388
    %v1391 = vadd.f32 %v1378, %v1214
    %v1392 = vlaneseq
    %v1393 = vshrl.u32 %v1392, 7
    %v1394 = vsub.s32 5, %v1393
    %v1395 = vrot.slane %v1391, %v1394
    %v1396 = vadd.f32 %v1395, %v1217
    %v1397 = vsel %vm1225, %v1396, -inf
    %1398 = vmax.xlane.f32.xlu0 %v1397
    %v1399 = vpop.xlane.xlu0 %1398
    %vm1400 = vcmp.eq.f32.partialorder %v1396, %v1399
    %v1401 = vsel %vm1400, %v161, 5
    %v1402 = vsel %vm1225, %v1401, 2147483647
    %v1403 = vand.u32 %v1402, 65535
    %v1404 = vshra.s32 %v1402, 16
    %v1405 = vcvt.s32.f32 %v1403
    %v1406 = vcvt.s32.f32 %v1404
    %1407 = vmin.xlane.f32.xlu0 %v1406
    %v1408 = vpop.xlane.xlu0 %1407
    %vm1409 = vcmp.eq.f32.partialorder %v1406, %v1408
    %v1410 = vsel %vm1409, %v1405, inf
    %1411 = vmin.xlane.f32.xlu0 %v1410
    %v1412 = vpop.xlane.xlu0 %1411
    %v1413 = vcvt.f32.s32 %v1412
    %v1414 = vcvt.f32.s32 %v1408
    %v1415 = vshll.u32 %v1414, 16
    %v1416 = vadd.s32 %v1415, %v1413
    %v1417 = vadd.f32 %v1399, %v1252
    %v1418 = vadd.f32 %v1417, %v1218
    %v1419 = vsel %vm1225, %v1418, -inf
    %v1420 = vrot.slane %v1419, 4
    %v1421 = vmax.f32 %v1419, %v1420
    %v1422 = vrot.slane %v1421, 2
    %v1423 = vmax.f32 %v1421, %v1422
    %v1424 = vrot.slane %v1423, 1
    %v1425 = vmax.f32 %v1423, %v1424
    %vm1426 = vcmp.eq.f32.partialorder %v1418, %v1425
    %v1427 = vsel %vm1426, %v1064, 5
    %v1428 = vsel %vm1225, %v1427, 2147483647
    %v1429 = vrot.slane %v1428, 4
    %vm1430 = vcmp.lt.s32.totalorder %v1428, %v1429
    %v1431 = vsel %vm1430, %v1428, %v1429
    %v1432 = vrot.slane %v1431, 2
    %vm1433 = vcmp.lt.s32.totalorder %v1431, %v1432
    %v1434 = vsel %vm1433, %v1431, %v1432
    %v1435 = vrot.slane %v1434, 1
    %vm1436 = vcmp.lt.s32.totalorder %v1434, %v1435
    %v1437 = vsel %vm1436, %v1434, %v1435
    %v1438 = vadd.f32 %v1425, %v1214
    %v1440 = vrot.slane %v1217, 5
    %v1442 = vadd.f32 %v1438, %v1440
    %vm1443 = vcmask 39943
    %v1444 = vsel %vm1443, %v1442, -inf
    %1445 = vmax.xlane.f32.xlu0 %v1444
    %v1446 = vpop.xlane.xlu0 %1445
    %vm1447 = vcmp.eq.f32.partialorder %v1442, %v1446
    %v1448 = vsel %vm1447, %v161, 5
    %v1449 = vsel %vm1443, %v1448, 2147483647
    %v1450 = vand.u32 %v1449, 65535
    %v1451 = vshra.s32 %v1449, 16
    %v1452 = vcvt.s32.f32 %v1450
    %v1453 = vcvt.s32.f32 %v1451
    %1454 = vmin.xlane.f32.xlu0 %v1453
    %v1455 = vpop.xlane.xlu0 %1454
    %vm1456 = vcmp.eq.f32.partialorder %v1453, %v1455
    %v1457 = vsel %vm1456, %v1452, inf
    %1458 = vmin.xlane.f32.xlu0 %v1457
    %v1459 = vpop.xlane.xlu0 %1458
    %v1460 = vcvt.f32.s32 %v1459
    %v1461 = vcvt.f32.s32 %v1455
    %v1462 = vshll.u32 %v1461, 16
    %v1463 = vadd.s32 %v1462, %v1460
    %vm1464 = vcmp.eq.s32.totalorder %v161, %v1463
    %v1465 = vsel %vm1464, %v1437, 0
    %v1466 = vsel %vm1443, %v1465, 0
    %v1467 = vand.u32 %v1466, 65535
    %v1468 = vshrl.u32 %v1466, 16
    %v1469 = vcvt.s32.f32 %v1467
    %v1470 = vcvt.s32.f32 %v1468
    %1471 = vadd.xlane.f32.xlu0 %v1469
    %v1472 = vpop.xlane.xlu0 %1471
    %1473 = vadd.xlane.f32.xlu0 %v1470
    %v1474 = vpop.xlane.xlu0 %1473
    %v1475 = vcvt.f32.s32 %v1472
    %v1476 = vcvt.f32.s32 %v1474
    %v1477 = vshll.u32 %v1476, 16
    %v1478 = vadd.s32 %v1477, %v1475
    %v1479 = vlaneseq
    %v1480 = vshrl.u32 %v1479, 7
    %v1481 = vsub.s32 7, %v1480
    %v1482 = vrot.slane %v1478, %v1481
    %vm1483 = vcmp.eq.s32.totalorder %v1064, %v1482
    %v1484 = vsel %vm1483, %v1416, 0
    %vm1485 = vcmask 1044480
    %v1486 = vsel %vm1485, %v1484, 0
    %v1487 = vrot.slane %v1486, 4
    %v1488 = vadd.s32 %v1486, %v1487
    %v1489 = vrot.slane %v1488, 2
    %v1490 = vadd.s32 %v1488, %v1489
    %v1491 = vrot.slane %v1490, 1
    %v1492 = vadd.s32 %v1490, %v1491
    %vm1493 = vcmp.eq.s32.totalorder %v161, %v1492
    %v1494 = vsel %vm1493, %v1390, 0
    %vm1495 = vcmask 39936
    %v1496 = vsel %vm1495, %v1494, 0
    %v1497 = vand.u32 %v1496, 65535
    %v1498 = vshrl.u32 %v1496, 16
    %v1499 = vcvt.s32.f32 %v1497
    %v1500 = vcvt.s32.f32 %v1498
    %1501 = vadd.xlane.f32.xlu0 %v1499
    %v1502 = vpop.xlane.xlu0 %1501
    %1503 = vadd.xlane.f32.xlu0 %v1500
    %v1504 = vpop.xlane.xlu0 %1503
    %v1505 = vcvt.f32.s32 %v1502
    %v1506 = vcvt.f32.s32 %v1504
    %v1507 = vshll.u32 %v1506, 16
    %v1508 = vadd.s32 %v1507, %v1505
    %vm1509 = vcmp.eq.s32.totalorder %v1064, %v1508
    %v1510 = vsel %vm1509, %v1369, 0
    %v1511 = vsel %vm1485, %v1510, 0
    %v1512 = vrot.slane %v1511, 4
    %v1513 = vadd.s32 %v1511, %v1512
    %v1514 = vrot.slane %v1513, 2
    %v1515 = vadd.s32 %v1513, %v1514
    %v1516 = vrot.slane %v1515, 1
    %v1517 = vadd.s32 %v1515, %v1516
    %vm1518 = vcmp.eq.s32.totalorder %v161, %v1517
    %v1519 = vsel %vm1518, %v1343, 0
    %v1520 = vsel %vm1495, %v1519, 0
    %v1521 = vand.u32 %v1520, 65535
    %v1522 = vshrl.u32 %v1520, 16
    %v1523 = vcvt.s32.f32 %v1521
    %v1524 = vcvt.s32.f32 %v1522
    %1525 = vadd.xlane.f32.xlu0 %v1523
    %v1526 = vpop.xlane.xlu0 %1525
    %1527 = vadd.xlane.f32.xlu0 %v1524
    %v1528 = vpop.xlane.xlu0 %1527
    %v1529 = vcvt.f32.s32 %v1526
    %v1530 = vcvt.f32.s32 %v1528
    %v1531 = vshll.u32 %v1530, 16
    %v1532 = vadd.s32 %v1531, %v1529
    %vm1533 = vcmp.eq.s32.totalorder %v1064, %v1532
    %v1534 = vsel %vm1533, %v1322, 0
    %v1535 = vsel %vm1485, %v1534, 0
    %v1536 = vrot.slane %v1535, 4
    %v1537 = vadd.s32 %v1535, %v1536
    %v1538 = vrot.slane %v1537, 2
    %v1539 = vadd.s32 %v1537, %v1538
    %v1540 = vrot.slane %v1539, 1
    %v1541 = vadd.s32 %v1539, %v1540
    %vm1542 = vcmp.eq.s32.totalorder %v161, %v1541
    %v1543 = vsel %vm1542, %v1296, 0
    %v1544 = vsel %vm1495, %v1543, 0
    %v1545 = vand.u32 %v1544, 65535
    %v1546 = vshrl.u32 %v1544, 16
    %v1547 = vcvt.s32.f32 %v1545
    %v1548 = vcvt.s32.f32 %v1546
    %1549 = vadd.xlane.f32.xlu0 %v1547
    %v1550 = vpop.xlane.xlu0 %1549
    %1551 = vadd.xlane.f32.xlu0 %v1548
    %v1552 = vpop.xlane.xlu0 %1551
    %v1553 = vcvt.f32.s32 %v1550
    %v1554 = vcvt.f32.s32 %v1552
    %v1555 = vshll.u32 %v1554, 16
    %v1556 = vadd.s32 %v1555, %v1553
    %vm1557 = vcmp.eq.s32.totalorder %v1064, %v1556
    %v1558 = vsel %vm1557, %v1275, 0
    %v1559 = vsel %vm1485, %v1558, 0
    %v1560 = vrot.slane %v1559, 4
    %v1561 = vadd.s32 %v1559, %v1560
    %v1562 = vrot.slane %v1561, 2
    %v1563 = vadd.s32 %v1561, %v1562
    %v1564 = vrot.slane %v1563, 1
    %v1565 = vadd.s32 %v1563, %v1564
    %vm1566 = vcmp.eq.s32.totalorder %v161, 0
    %v1567 = vsel %vm1566, %v1565, 0
    %vm1568 = vcmp.eq.s32.totalorder %v161, 1
    %v1569 = vsel %vm1568, %v1556, %v1567
    %vm1570 = vcmp.eq.s32.totalorder %v161, 2
    %v1571 = vsel %vm1570, %v1541, %v1569
    %v1572 = vsel %vm1253, %v1532, %v1571
    %vm1573 = vcmp.eq.s32.totalorder %v161, 4
    %v1574 = vsel %vm1573, %v1517, %v1572
    %vm1575 = vcmp.eq.s32.totalorder %v161, 5
    %v1576 = vsel %vm1575, %v1508, %v1574
    %vm1577 = vcmp.eq.s32.totalorder %v161, 6
    %v1578 = vsel %vm1577, %v1492, %v1576
    %vm1579 = vcmp.eq.s32.totalorder %v161, 7
    %v1580 = vsel %vm1579, %v1478, %v1578
    %vm1581 = vcmp.eq.s32.totalorder %v161, 8
    %v1582 = vsel %vm1581, %v1463, %v1580
    %vm1583 = vcmask 7175
    %1584 = vst.msk [vmem:[#allocation8 - $0x7] sm:$0x80] %vm1583, %v1446
    %vm1585 = vcmask 72711
    %1586 = vst.msk [vmem:[#allocation9 - $0x7] sm:$0x80] %vm1585, %v1582
    // Predicated region
    $region54: #{tpu_custom_call.1} parent=1 // pred_check
      _
    $region55: #{tpu_custom_call.1} parent=1 // pred_check_branch
      %1588 = sbr.rel (0) target = $region57
    $region56: #{tpu_custom_call.1} parent=1 // pred_region
      %s1590 = ssub.s32 16, 16
      %1591 = vsyncadd [#allocation4], %s1590
      %s1593 = sshll.u32 [#allocation8], 4
      %s1594 = int_to_ptr.vmem [resolvable:$true] %s1593
      %1596 = dma.vmem_to_hbm [thread:$0]  %s1594, 16, %s10, [#allocation4]
    $region57: #{tpu_custom_call.1} parent=1 // pred_fallthru
      _
    // Predicated region
    $region58: #{tpu_custom_call.1} parent=1 // pred_check
      _
    $region59: #{tpu_custom_call.1} parent=1 // pred_check_branch
      %1598 = sbr.rel (0) target = $region61
    $region60: #{tpu_custom_call.1} parent=1 // pred_region
      %s1600 = ssub.s32 16, 16
      %1601 = vsyncadd [#allocation10], %s1600
      %s1603 = sshll.u32 [#allocation9], 4
      %s1604 = int_to_ptr.vmem [resolvable:$true] %s1603
      %1606 = dma.vmem_to_hbm [thread:$0]  %s1604, 16, %s11, [#allocation10]
    $region61: #{tpu_custom_call.1} parent=1 // pred_fallthru
      _
    // Predicated region
    $region62: #{tpu_custom_call.1} parent=1 // pred_check
      _
    $region63: #{tpu_custom_call.1} parent=1 // pred_check_branch
      %1608 = sbr.rel (0) target = $region65
    $region64: #{tpu_custom_call.1} parent=1 // pred_region
      %1609 = dma.done [#allocation4], 16
    $region65: #{tpu_custom_call.1} parent=1 // pred_fallthru
      _
    // Predicated region
    $region66: #{tpu_custom_call.1} parent=1 // pred_check
      _
    $region67: #{tpu_custom_call.1} parent=1 // pred_check_branch
      %1611 = sbr.rel (0) target = $region69
    $region68: #{tpu_custom_call.1} parent=1 // pred_region
      %1612 = dma.done [#allocation10], 16
    $region69: #{tpu_custom_call.1} parent=1 // pred_fallthru
      _
    %1613 = vsyncpa [#allocation3], 1
    %1614 = vsyncpa [#allocation6], 1
    %1615 = vsyncpa [#allocation4], 1
    %1616 = vsyncpa [#allocation10], 1

</llo_original>
